<compile_context>
chip_gen: v5e
topology: v5e:2x2
jax: 0.10.0
libtpu: 0.0.40
codegen_flags: <defaults>
</compile_context>

<pallas_src>
import functools

import jax
import jax.numpy as jnp
from jax import lax
from jax.experimental import pallas as pl
from jax.experimental.pallas import tpu as pltpu

EPS = 1e-5  # torch.nn.BatchNorm2d default eps


def _processing_kernel(x_ref, gamma_ref, beta_ref, ypos_ref, xpos_ref,
                       w_ref, b_ref, o_ref, tap_scr,
                       *, k, p, height, width):
    """ProcessingLayer forward on one VMEM-resident, lane-dense block.

    x_ref    : (C, NHW)   f32 VMEM  input, channels on sublanes, N*H*W on lanes
    gamma_ref: (C, 1)     f32 VMEM  BN weight
    beta_ref : (C, 1)     f32 VMEM  BN bias
    ypos_ref : (1, NHW)   i32 VMEM  row index inside the image, per lane
    xpos_ref : (1, NHW)   i32 VMEM  col index inside the image, per lane
    w_ref    : (Cout*Cin*k*k,) f32 SMEM  conv weights (OIHW flat, already *3)
    b_ref    : (Cout,)    f32 SMEM  conv bias
    o_ref    : (Cout, NHW) f32 VMEM output
    tap_scr  : (C, NHW)   f32 VMEM  scratch for the rolled+masked tap slab
    """
    C, NHW = x_ref.shape
    Cout = o_ref.shape[0]

    x = x_ref[...]                                       # (C, NHW)

    # --- BatchNorm2d (training-mode batch stats), two-pass -------------------
    inv_n = 1.0 / NHW
    mean = jnp.sum(x, axis=-1, keepdims=True) * inv_n    # (C, 1)
    d = x - mean                                         # (C, NHW)
    var = jnp.sum(d * d, axis=-1, keepdims=True) * inv_n # (C, 1), biased
    inv_std = lax.rsqrt(var + EPS)                       # (C, 1)

    # --- TanhActivation: tanh(bn(x)/3); the trailing *3 lives in w_ref -------
    third = 1.0 / 3.0
    scale = gamma_ref[...] * inv_std * third             # (C, 1), hoisted
    beta3 = beta_ref[...] * third                        # (C, 1), hoisted
    act = jnp.tanh(d * scale + beta3)                    # (C, NHW)

    # --- Halo masks: one compare per offset, from precomputed ypos/xpos ------
    ypos = ypos_ref[...]                                 # (1, NHW) i32
    xpos = xpos_ref[...]
    ymask = {}
    xmask = {}
    for dd in range(1, p + 1):
        ymask[dd] = ypos < (height - dd)
        ymask[-dd] = ypos >= dd
        xmask[dd] = xpos < (width - dd)
        xmask[-dd] = xpos >= dd

    # --- Conv2d (stride 1, "same" pad) as roll + mask + scalar*vector FMAs ---
    # TODO(synk): once Cin >= ~16, replace the VPU FMA path with an im2col-by-
    # shifts MXU matmul (Cout, k*k*Cin) x (k*k*Cin, lane_tile).
    acc = [jnp.zeros((1, NHW), jnp.float32) for _ in range(Cout)]
    for i in range(k):
        for j in range(k):
            dy = i - p
            dx = j - p
            off = dy * width + dx
            # tap[:, s] = act[:, s + off]; any lane that wraps is masked below.
            tap = act if off == 0 else pltpu.roll(act, (-off) % NHW, axis=1)
            if dy != 0 or dx != 0:                       # center tap: no mask
                if dy == 0:
                    m = xmask[dx]
                elif dx == 0:
                    m = ymask[dy]
                else:
                    m = jnp.logical_and(ymask[dy], xmask[dx])
                tap = jnp.where(m, tap, 0.0)
            tap_scr[...] = tap                           # slab -> VMEM scratch
            for ci in range(C):
                row = tap_scr[pl.ds(ci, 1), :]           # (1, NHW), vld slot
                for co in range(Cout):
                    w = w_ref[((co * C + ci) * k + i) * k + j]  # SMEM scalar
                    acc[co] = acc[co] + w * row          # scalar x vector FMA

    # --- conv bias + residual (SummationLayer); re-read x rows from VMEM -----
    for co in range(Cout):
        o_ref[pl.ds(co, 1), :] = x_ref[pl.ds(co, 1), :] + acc[co] + b_ref[co]


def processing_layer(x_nchw, gamma, beta, w_oihw, bias, kernel_size):
    """JAX wrapper reproducing ProcessingLayer.forward on NCHW input."""
    N, C, H, W = x_nchw.shape
    k = kernel_size
    p = (k - 1) // 2
    Cout = w_oihw.shape[0]
    # Residual add requires num_filters == in_channels (module guarantees it).
    assert Cout == C, "ProcessingLayer residual add requires Cout == Cin"
    NHW = N * H * W

    # Lane-dense relayout: channels -> sublanes, flattened N*H*W -> lanes.
    x2 = jnp.transpose(x_nchw, (1, 0, 2, 3)).reshape(C, NHW).astype(jnp.float32)
    gamma2 = gamma.reshape(C, 1).astype(jnp.float32)
    beta2 = beta.reshape(C, 1).astype(jnp.float32)

    # Per-lane (y, x) position within one image — keeps // and % off the VPU.
    r = jnp.arange(NHW, dtype=jnp.int32) % (H * W)
    ypos = (r // W).reshape(1, NHW)
    xpos = (r % W).reshape(1, NHW)

    # Conv params as flat SMEM scalars; fold the tanh *3 into the weights.
    w_flat = (3.0 * w_oihw.astype(jnp.float32)).reshape(-1)   # OIHW flat order
    b_flat = bias.astype(jnp.float32).reshape(-1)

    kernel = functools.partial(_processing_kernel, k=k, p=p, height=H, width=W)

    vmem = pltpu.MemorySpace.VMEM
    smem = pltpu.MemorySpace.SMEM

    # TODO(synk): for non-toy shapes, grid over images (conv halos stay inside
    # a block), lane tiles >= 512 (multiple of 128), two-pass BN across blocks
    # (pass 1: per-block sum/sumsq accumulation; pass 2: normalize+tanh+conv+
    # residual), mark the image axis "parallel" (2 TCs on v7x) and set
    # vmem_limit_bytes per generation (64 MiB VMEM on v7x, 128 MiB v5e/v6e).
    # At this shape the whole problem is a few vregs, so it runs as one block.
    out2 = pl.pallas_call(
        kernel,
        out_shape=jax.ShapeDtypeStruct((Cout, NHW), jnp.float32),
        in_specs=[pl.BlockSpec(memory_space=vmem)] * 5
                 + [pl.BlockSpec(memory_space=smem)] * 2,
        out_specs=pl.BlockSpec(memory_space=vmem),
        scratch_shapes=[pltpu.VMEM((C, NHW), jnp.float32)],
    )(x2, gamma2, beta2, ypos, xpos, w_flat, b_flat)

    return jnp.transpose(out2.reshape(Cout, N, H, W), (1, 0, 2, 3))


def processing_layer_ref(x_nchw, gamma, beta, w_oihw, bias, kernel_size):
    """Pure-JAX reference (mirrors the PyTorch module, training-mode BN)."""
    p = (kernel_size - 1) // 2
    x = x_nchw.astype(jnp.float32)
    mean = jnp.mean(x, axis=(0, 2, 3), keepdims=True)
    var = jnp.mean((x - mean) ** 2, axis=(0, 2, 3), keepdims=True)
    xn = (x - mean) / jnp.sqrt(var + EPS)
    xn = xn * gamma.reshape(1, -1, 1, 1) + beta.reshape(1, -1, 1, 1)
    act = jnp.tanh(xn / 3.0) * 3.0
    conv = lax.conv_general_dilated(
        act, w_oihw.astype(jnp.float32), window_strides=(1, 1),
        padding=[(p, p), (p, p)],
        dimension_numbers=("NCHW", "OIHW", "NCHW"))
    conv = conv + bias.reshape(1, -1, 1, 1)
    return x + conv


if __name__ == "__main__":
    # Small shapes consistent with the module: ProcessingLayer(in_channels=4, kernel_size=3)
    N, C, H, W = 2, 4, 16, 16
    K = 3

    key = jax.random.PRNGKey(0)
    kx, kw, kb, kg, kbeta = jax.random.split(key, 5)

    x = jax.random.normal(kx, (N, C, H, W), dtype=jnp.float32)

    # Deterministic synthetic parameters (exercise the full affine path).
    gamma = 1.0 + 0.1 * jax.random.normal(kg, (C,), dtype=jnp.float32)
    beta = 0.1 * jax.random.normal(kbeta, (C,), dtype=jnp.float32)
    w_oihw = 0.1 * jax.random.normal(kw, (C, C, K, K), dtype=jnp.float32)
    bias = 0.1 * jax.random.normal(kb, (C,), dtype=jnp.float32)

    out = processing_layer(x, gamma, beta, w_oihw, bias, K)
    out = jax.block_until_ready(out)

    ref = processing_layer_ref(x, gamma, beta, w_oihw, bias, K)
    assert out.shape == (N, C, H, W)
    assert jnp.allclose(out, ref, rtol=1e-4, atol=1e-4), (
        f"max abs err {jnp.max(jnp.abs(out - ref))}")

    print("KERNEL_OK")
</pallas_src>

<mosaic_0001>
module attributes {stable_mosaic.version = 11 : i64} {
  func.func @_processing_kernel(%arg0: memref<4x512xf32, #tpu.memory_space<vmem>>, %arg1: memref<4x1xf32, #tpu.memory_space<vmem>>, %arg2: memref<4x1xf32, #tpu.memory_space<vmem>>, %arg3: memref<1x512xi32, #tpu.memory_space<vmem>>, %arg4: memref<1x512xi32, #tpu.memory_space<vmem>>, %arg5: memref<144xf32, #tpu.memory_space<smem>>, %arg6: memref<4xf32, #tpu.memory_space<smem>>, %arg7: memref<4x512xf32, #tpu.memory_space<vmem>>, %arg8: memref<4x512xf32, #tpu.memory_space<vmem>>) attributes {dimension_semantics = [], scalar_prefetch = 0 : i64, scratch_operands = 1 : i64, tpu.core_type = #tpu.core_type<tc>} {
    %c0 = arith.constant 0 : index
    %c0_0 = arith.constant 0 : index
    %0 = vector.load %arg0[%c0, %c0_0] : memref<4x512xf32, #tpu.memory_space<vmem>>, vector<4x512xf32>
    %cst = arith.constant dense<0.000000e+00> : vector<4xf32>
    %1 = vector.multi_reduction <add>, %0, %cst [1] : vector<4x512xf32> to vector<4xf32>
    %2 = vector.shape_cast %1 : vector<4xf32> to vector<4x1xf32>
    %cst_1 = arith.constant 0.001953125 : f32
    %3 = vector.broadcast %cst_1 : f32 to vector<4x1xf32>
    %4 = arith.mulf %2, %3 : vector<4x1xf32>
    %5 = vector.broadcast %4 : vector<4x1xf32> to vector<4x512xf32>
    %6 = arith.subf %0, %5 : vector<4x512xf32>
    %7 = arith.mulf %6, %6 : vector<4x512xf32>
    %cst_2 = arith.constant dense<0.000000e+00> : vector<4xf32>
    %8 = vector.multi_reduction <add>, %7, %cst_2 [1] : vector<4x512xf32> to vector<4xf32>
    %9 = vector.shape_cast %8 : vector<4xf32> to vector<4x1xf32>
    %cst_3 = arith.constant 0.001953125 : f32
    %10 = vector.broadcast %cst_3 : f32 to vector<4x1xf32>
    %11 = arith.mulf %9, %10 : vector<4x1xf32>
    %cst_4 = arith.constant 9.99999974E-6 : f32
    %12 = vector.broadcast %cst_4 : f32 to vector<4x1xf32>
    %13 = arith.addf %11, %12 : vector<4x1xf32>
    %14 = math.rsqrt %13 : vector<4x1xf32>
    %c0_5 = arith.constant 0 : index
    %c0_6 = arith.constant 0 : index
    %15 = vector.load %arg1[%c0_5, %c0_6] : memref<4x1xf32, #tpu.memory_space<vmem>>, vector<4x1xf32>
    %16 = arith.mulf %15, %14 : vector<4x1xf32>
    %cst_7 = arith.constant 0.333333343 : f32
    %17 = vector.broadcast %cst_7 : f32 to vector<4x1xf32>
    %18 = arith.mulf %16, %17 : vector<4x1xf32>
    %c0_8 = arith.constant 0 : index
    %c0_9 = arith.constant 0 : index
    %19 = vector.load %arg2[%c0_8, %c0_9] : memref<4x1xf32, #tpu.memory_space<vmem>>, vector<4x1xf32>
    %cst_10 = arith.constant 0.333333343 : f32
    %20 = vector.broadcast %cst_10 : f32 to vector<4x1xf32>
    %21 = arith.mulf %19, %20 : vector<4x1xf32>
    %22 = vector.broadcast %18 : vector<4x1xf32> to vector<4x512xf32>
    %23 = arith.mulf %6, %22 : vector<4x512xf32>
    %24 = vector.broadcast %21 : vector<4x1xf32> to vector<4x512xf32>
    %25 = arith.addf %23, %24 : vector<4x512xf32>
    %26 = math.tanh %25 : vector<4x512xf32>
    %c0_11 = arith.constant 0 : index
    %c0_12 = arith.constant 0 : index
    %27 = vector.load %arg3[%c0_11, %c0_12] : memref<1x512xi32, #tpu.memory_space<vmem>>, vector<1x512xi32>
    %c0_13 = arith.constant 0 : index
    %c0_14 = arith.constant 0 : index
    %28 = vector.load %arg4[%c0_13, %c0_14] : memref<1x512xi32, #tpu.memory_space<vmem>>, vector<1x512xi32>
    %c15_i32 = arith.constant 15 : i32
    %29 = vector.broadcast %c15_i32 : i32 to vector<1x512xi32>
    %30 = arith.cmpi slt, %27, %29 : vector<1x512xi32>
    %c1_i32 = arith.constant 1 : i32
    %31 = vector.broadcast %c1_i32 : i32 to vector<1x512xi32>
    %32 = arith.cmpi sge, %27, %31 : vector<1x512xi32>
    %c15_i32_15 = arith.constant 15 : i32
    %33 = vector.broadcast %c15_i32_15 : i32 to vector<1x512xi32>
    %34 = arith.cmpi slt, %28, %33 : vector<1x512xi32>
    %c1_i32_16 = arith.constant 1 : i32
    %35 = vector.broadcast %c1_i32_16 : i32 to vector<1x512xi32>
    %36 = arith.cmpi sge, %28, %35 : vector<1x512xi32>
    %cst_17 = arith.constant 0.000000e+00 : f32
    %37 = vector.broadcast %cst_17 : f32 to vector<1x512xf32>
    %cst_18 = arith.constant 0.000000e+00 : f32
    %38 = vector.broadcast %cst_18 : f32 to vector<1x512xf32>
    %cst_19 = arith.constant 0.000000e+00 : f32
    %39 = vector.broadcast %cst_19 : f32 to vector<1x512xf32>
    %cst_20 = arith.constant 0.000000e+00 : f32
    %40 = vector.broadcast %cst_20 : f32 to vector<1x512xf32>
    %c17_i32 = arith.constant 17 : i32
    %41 = tpu.dynamic_rotate %26 by %c17_i32 dim 1 : vector<4x512xf32>, i32 -> vector<4x512xf32>
    %42 = arith.andi %32, %36 : vector<1x512xi1>
    %cst_21 = arith.constant 0.000000e+00 : f32
    %43 = vector.shape_cast %42 : vector<1x512xi1> to vector<1x512xi1>
    %44 = vector.broadcast %43 : vector<1x512xi1> to vector<4x512xi1>
    %45 = vector.broadcast %cst_21 : f32 to vector<4x512xf32>
    %46 = arith.select %44, %41, %45 : vector<4x512xi1>, vector<4x512xf32>
    %c0_22 = arith.constant 0 : index
    %c0_23 = arith.constant 0 : index
    %47 = vector.load %arg8[%c0_22, %c0_23] : memref<4x512xf32, #tpu.memory_space<vmem>>, vector<4x512xf32>
    tpu.vector_store %arg8[%c0_22, %c0_23], %46 {strides = array<i32>} : memref<4x512xf32, #tpu.memory_space<vmem>>, vector<4x512xf32>,
    %c0_24 = arith.constant 0 : index
    %c0_25 = arith.constant 0 : index
    %48 = vector.load %arg8[%c0_24, %c0_25] : memref<4x512xf32, #tpu.memory_space<vmem>>, vector<1x512xf32>
    %c0_26 = arith.constant 0 : index
    %49 = memref.load %arg5[%c0_26] : memref<144xf32, #tpu.memory_space<smem>>
    %50 = vector.broadcast %49 : f32 to vector<1x512xf32>
    %51 = arith.mulf %50, %48 : vector<1x512xf32>
    %52 = arith.addf %37, %51 : vector<1x512xf32>
    %c36 = arith.constant 36 : index
    %53 = memref.load %arg5[%c36] : memref<144xf32, #tpu.memory_space<smem>>
    %54 = vector.broadcast %53 : f32 to vector<1x512xf32>
    %55 = arith.mulf %54, %48 : vector<1x512xf32>
    %56 = arith.addf %38, %55 : vector<1x512xf32>
    %c72 = arith.constant 72 : index
    %57 = memref.load %arg5[%c72] : memref<144xf32, #tpu.memory_space<smem>>
    %58 = vector.broadcast %57 : f32 to vector<1x512xf32>
    %59 = arith.mulf %58, %48 : vector<1x512xf32>
    %60 = arith.addf %39, %59 : vector<1x512xf32>
    %c108 = arith.constant 108 : index
    %61 = memref.load %arg5[%c108] : memref<144xf32, #tpu.memory_space<smem>>
    %62 = vector.broadcast %61 : f32 to vector<1x512xf32>
    %63 = arith.mulf %62, %48 : vector<1x512xf32>
    %64 = arith.addf %40, %63 : vector<1x512xf32>
    %c1 = arith.constant 1 : index
    %c0_27 = arith.constant 0 : index
    %65 = vector.load %arg8[%c1, %c0_27] : memref<4x512xf32, #tpu.memory_space<vmem>>, vector<1x512xf32>
    %c9 = arith.constant 9 : index
    %66 = memref.load %arg5[%c9] : memref<144xf32, #tpu.memory_space<smem>>
    %67 = vector.broadcast %66 : f32 to vector<1x512xf32>
    %68 = arith.mulf %67, %65 : vector<1x512xf32>
    %69 = arith.addf %52, %68 : vector<1x512xf32>
    %c45 = arith.constant 45 : index
    %70 = memref.load %arg5[%c45] : memref<144xf32, #tpu.memory_space<smem>>
    %71 = vector.broadcast %70 : f32 to vector<1x512xf32>
    %72 = arith.mulf %71, %65 : vector<1x512xf32>
    %73 = arith.addf %56, %72 : vector<1x512xf32>
    %c81 = arith.constant 81 : index
    %74 = memref.load %arg5[%c81] : memref<144xf32, #tpu.memory_space<smem>>
    %75 = vector.broadcast %74 : f32 to vector<1x512xf32>
    %76 = arith.mulf %75, %65 : vector<1x512xf32>
    %77 = arith.addf %60, %76 : vector<1x512xf32>
    %c117 = arith.constant 117 : index
    %78 = memref.load %arg5[%c117] : memref<144xf32, #tpu.memory_space<smem>>
    %79 = vector.broadcast %78 : f32 to vector<1x512xf32>
    %80 = arith.mulf %79, %65 : vector<1x512xf32>
    %81 = arith.addf %64, %80 : vector<1x512xf32>
    %c2 = arith.constant 2 : index
    %c0_28 = arith.constant 0 : index
    %82 = vector.load %arg8[%c2, %c0_28] : memref<4x512xf32, #tpu.memory_space<vmem>>, vector<1x512xf32>
    %c18 = arith.constant 18 : index
    %83 = memref.load %arg5[%c18] : memref<144xf32, #tpu.memory_space<smem>>
    %84 = vector.broadcast %83 : f32 to vector<1x512xf32>
    %85 = arith.mulf %84, %82 : vector<1x512xf32>
    %86 = arith.addf %69, %85 : vector<1x512xf32>
    %c54 = arith.constant 54 : index
    %87 = memref.load %arg5[%c54] : memref<144xf32, #tpu.memory_space<smem>>
    %88 = vector.broadcast %87 : f32 to vector<1x512xf32>
    %89 = arith.mulf %88, %82 : vector<1x512xf32>
    %90 = arith.addf %73, %89 : vector<1x512xf32>
    %c90 = arith.constant 90 : index
    %91 = memref.load %arg5[%c90] : memref<144xf32, #tpu.memory_space<smem>>
    %92 = vector.broadcast %91 : f32 to vector<1x512xf32>
    %93 = arith.mulf %92, %82 : vector<1x512xf32>
    %94 = arith.addf %77, %93 : vector<1x512xf32>
    %c126 = arith.constant 126 : index
    %95 = memref.load %arg5[%c126] : memref<144xf32, #tpu.memory_space<smem>>
    %96 = vector.broadcast %95 : f32 to vector<1x512xf32>
    %97 = arith.mulf %96, %82 : vector<1x512xf32>
    %98 = arith.addf %81, %97 : vector<1x512xf32>
    %c3 = arith.constant 3 : index
    %c0_29 = arith.constant 0 : index
    %99 = vector.load %arg8[%c3, %c0_29] : memref<4x512xf32, #tpu.memory_space<vmem>>, vector<1x512xf32>
    %c27 = arith.constant 27 : index
    %100 = memref.load %arg5[%c27] : memref<144xf32, #tpu.memory_space<smem>>
    %101 = vector.broadcast %100 : f32 to vector<1x512xf32>
    %102 = arith.mulf %101, %99 : vector<1x512xf32>
    %103 = arith.addf %86, %102 : vector<1x512xf32>
    %c63 = arith.constant 63 : index
    %104 = memref.load %arg5[%c63] : memref<144xf32, #tpu.memory_space<smem>>
    %105 = vector.broadcast %104 : f32 to vector<1x512xf32>
    %106 = arith.mulf %105, %99 : vector<1x512xf32>
    %107 = arith.addf %90, %106 : vector<1x512xf32>
    %c99 = arith.constant 99 : index
    %108 = memref.load %arg5[%c99] : memref<144xf32, #tpu.memory_space<smem>>
    %109 = vector.broadcast %108 : f32 to vector<1x512xf32>
    %110 = arith.mulf %109, %99 : vector<1x512xf32>
    %111 = arith.addf %94, %110 : vector<1x512xf32>
    %c135 = arith.constant 135 : index
    %112 = memref.load %arg5[%c135] : memref<144xf32, #tpu.memory_space<smem>>
    %113 = vector.broadcast %112 : f32 to vector<1x512xf32>
    %114 = arith.mulf %113, %99 : vector<1x512xf32>
    %115 = arith.addf %98, %114 : vector<1x512xf32>
    %c16_i32 = arith.constant 16 : i32
    %116 = tpu.dynamic_rotate %26 by %c16_i32 dim 1 : vector<4x512xf32>, i32 -> vector<4x512xf32>
    %cst_30 = arith.constant 0.000000e+00 : f32
    %117 = vector.shape_cast %32 : vector<1x512xi1> to vector<1x512xi1>
    %118 = vector.broadcast %117 : vector<1x512xi1> to vector<4x512xi1>
    %119 = vector.broadcast %cst_30 : f32 to vector<4x512xf32>
    %120 = arith.select %118, %116, %119 : vector<4x512xi1>, vector<4x512xf32>
    %c0_31 = arith.constant 0 : index
    %c0_32 = arith.constant 0 : index
    %121 = vector.load %arg8[%c0_31, %c0_32] : memref<4x512xf32, #tpu.memory_space<vmem>>, vector<4x512xf32>
    tpu.vector_store %arg8[%c0_31, %c0_32], %120 {strides = array<i32>} : memref<4x512xf32, #tpu.memory_space<vmem>>, vector<4x512xf32>,
    %c0_33 = arith.constant 0 : index
    %c0_34 = arith.constant 0 : index
    %122 = vector.load %arg8[%c0_33, %c0_34] : memref<4x512xf32, #tpu.memory_space<vmem>>, vector<1x512xf32>
    %c1_35 = arith.constant 1 : index
    %123 = memref.load %arg5[%c1_35] : memref<144xf32, #tpu.memory_space<smem>>
    %124 = vector.broadcast %123 : f32 to vector<1x512xf32>
    %125 = arith.mulf %124, %122 : vector<1x512xf32>
    %126 = arith.addf %103, %125 : vector<1x512xf32>
    %c37 = arith.constant 37 : index
    %127 = memref.load %arg5[%c37] : memref<144xf32, #tpu.memory_space<smem>>
    %128 = vector.broadcast %127 : f32 to vector<1x512xf32>
    %129 = arith.mulf %128, %122 : vector<1x512xf32>
    %130 = arith.addf %107, %129 : vector<1x512xf32>
    %c73 = arith.constant 73 : index
    %131 = memref.load %arg5[%c73] : memref<144xf32, #tpu.memory_space<smem>>
    %132 = vector.broadcast %131 : f32 to vector<1x512xf32>
    %133 = arith.mulf %132, %122 : vector<1x512xf32>
    %134 = arith.addf %111, %133 : vector<1x512xf32>
    %c109 = arith.constant 109 : index
    %135 = memref.load %arg5[%c109] : memref<144xf32, #tpu.memory_space<smem>>
    %136 = vector.broadcast %135 : f32 to vector<1x512xf32>
    %137 = arith.mulf %136, %122 : vector<1x512xf32>
    %138 = arith.addf %115, %137 : vector<1x512xf32>
    %c1_36 = arith.constant 1 : index
    %c0_37 = arith.constant 0 : index
    %139 = vector.load %arg8[%c1_36, %c0_37] : memref<4x512xf32, #tpu.memory_space<vmem>>, vector<1x512xf32>
    %c10 = arith.constant 10 : index
    %140 = memref.load %arg5[%c10] : memref<144xf32, #tpu.memory_space<smem>>
    %141 = vector.broadcast %140 : f32 to vector<1x512xf32>
    %142 = arith.mulf %141, %139 : vector<1x512xf32>
    %143 = arith.addf %126, %142 : vector<1x512xf32>
    %c46 = arith.constant 46 : index
    %144 = memref.load %arg5[%c46] : memref<144xf32, #tpu.memory_space<smem>>
    %145 = vector.broadcast %144 : f32 to vector<1x512xf32>
    %146 = arith.mulf %145, %139 : vector<1x512xf32>
    %147 = arith.addf %130, %146 : vector<1x512xf32>
    %c82 = arith.constant 82 : index
    %148 = memref.load %arg5[%c82] : memref<144xf32, #tpu.memory_space<smem>>
    %149 = vector.broadcast %148 : f32 to vector<1x512xf32>
    %150 = arith.mulf %149, %139 : vector<1x512xf32>
    %151 = arith.addf %134, %150 : vector<1x512xf32>
    %c118 = arith.constant 118 : index
    %152 = memref.load %arg5[%c118] : memref<144xf32, #tpu.memory_space<smem>>
    %153 = vector.broadcast %152 : f32 to vector<1x512xf32>
    %154 = arith.mulf %153, %139 : vector<1x512xf32>
    %155 = arith.addf %138, %154 : vector<1x512xf32>
    %c2_38 = arith.constant 2 : index
    %c0_39 = arith.constant 0 : index
    %156 = vector.load %arg8[%c2_38, %c0_39] : memref<4x512xf32, #tpu.memory_space<vmem>>, vector<1x512xf32>
    %c19 = arith.constant 19 : index
    %157 = memref.load %arg5[%c19] : memref<144xf32, #tpu.memory_space<smem>>
    %158 = vector.broadcast %157 : f32 to vector<1x512xf32>
    %159 = arith.mulf %158, %156 : vector<1x512xf32>
    %160 = arith.addf %143, %159 : vector<1x512xf32>
    %c55 = arith.constant 55 : index
    %161 = memref.load %arg5[%c55] : memref<144xf32, #tpu.memory_space<smem>>
    %162 = vector.broadcast %161 : f32 to vector<1x512xf32>
    %163 = arith.mulf %162, %156 : vector<1x512xf32>
    %164 = arith.addf %147, %163 : vector<1x512xf32>
    %c91 = arith.constant 91 : index
    %165 = memref.load %arg5[%c91] : memref<144xf32, #tpu.memory_space<smem>>
    %166 = vector.broadcast %165 : f32 to vector<1x512xf32>
    %167 = arith.mulf %166, %156 : vector<1x512xf32>
    %168 = arith.addf %151, %167 : vector<1x512xf32>
    %c127 = arith.constant 127 : index
    %169 = memref.load %arg5[%c127] : memref<144xf32, #tpu.memory_space<smem>>
    %170 = vector.broadcast %169 : f32 to vector<1x512xf32>
    %171 = arith.mulf %170, %156 : vector<1x512xf32>
    %172 = arith.addf %155, %171 : vector<1x512xf32>
    %c3_40 = arith.constant 3 : index
    %c0_41 = arith.constant 0 : index
    %173 = vector.load %arg8[%c3_40, %c0_41] : memref<4x512xf32, #tpu.memory_space<vmem>>, vector<1x512xf32>
    %c28 = arith.constant 28 : index
    %174 = memref.load %arg5[%c28] : memref<144xf32, #tpu.memory_space<smem>>
    %175 = vector.broadcast %174 : f32 to vector<1x512xf32>
    %176 = arith.mulf %175, %173 : vector<1x512xf32>
    %177 = arith.addf %160, %176 : vector<1x512xf32>
    %c64 = arith.constant 64 : index
    %178 = memref.load %arg5[%c64] : memref<144xf32, #tpu.memory_space<smem>>
    %179 = vector.broadcast %178 : f32 to vector<1x512xf32>
    %180 = arith.mulf %179, %173 : vector<1x512xf32>
    %181 = arith.addf %164, %180 : vector<1x512xf32>
    %c100 = arith.constant 100 : index
    %182 = memref.load %arg5[%c100] : memref<144xf32, #tpu.memory_space<smem>>
    %183 = vector.broadcast %182 : f32 to vector<1x512xf32>
    %184 = arith.mulf %183, %173 : vector<1x512xf32>
    %185 = arith.addf %168, %184 : vector<1x512xf32>
    %c136 = arith.constant 136 : index
    %186 = memref.load %arg5[%c136] : memref<144xf32, #tpu.memory_space<smem>>
    %187 = vector.broadcast %186 : f32 to vector<1x512xf32>
    %188 = arith.mulf %187, %173 : vector<1x512xf32>
    %189 = arith.addf %172, %188 : vector<1x512xf32>
    %c15_i32_42 = arith.constant 15 : i32
    %190 = tpu.dynamic_rotate %26 by %c15_i32_42 dim 1 : vector<4x512xf32>, i32 -> vector<4x512xf32>
    %191 = arith.andi %32, %34 : vector<1x512xi1>
    %cst_43 = arith.constant 0.000000e+00 : f32
    %192 = vector.shape_cast %191 : vector<1x512xi1> to vector<1x512xi1>
    %193 = vector.broadcast %192 : vector<1x512xi1> to vector<4x512xi1>
    %194 = vector.broadcast %cst_43 : f32 to vector<4x512xf32>
    %195 = arith.select %193, %190, %194 : vector<4x512xi1>, vector<4x512xf32>
    %c0_44 = arith.constant 0 : index
    %c0_45 = arith.constant 0 : index
    %196 = vector.load %arg8[%c0_44, %c0_45] : memref<4x512xf32, #tpu.memory_space<vmem>>, vector<4x512xf32>
    tpu.vector_store %arg8[%c0_44, %c0_45], %195 {strides = array<i32>} : memref<4x512xf32, #tpu.memory_space<vmem>>, vector<4x512xf32>,
    %c0_46 = arith.constant 0 : index
    %c0_47 = arith.constant 0 : index
    %197 = vector.load %arg8[%c0_46, %c0_47] : memref<4x512xf32, #tpu.memory_space<vmem>>, vector<1x512xf32>
    %c2_48 = arith.constant 2 : index
    %198 = memref.load %arg5[%c2_48] : memref<144xf32, #tpu.memory_space<smem>>
    %199 = vector.broadcast %198 : f32 to vector<1x512xf32>
    %200 = arith.mulf %199, %197 : vector<1x512xf32>
    %201 = arith.addf %177, %200 : vector<1x512xf32>
    %c38 = arith.constant 38 : index
    %202 = memref.load %arg5[%c38] : memref<144xf32, #tpu.memory_space<smem>>
    %203 = vector.broadcast %202 : f32 to vector<1x512xf32>
    %204 = arith.mulf %203, %197 : vector<1x512xf32>
    %205 = arith.addf %181, %204 : vector<1x512xf32>
    %c74 = arith.constant 74 : index
    %206 = memref.load %arg5[%c74] : memref<144xf32, #tpu.memory_space<smem>>
    %207 = vector.broadcast %206 : f32 to vector<1x512xf32>
    %208 = arith.mulf %207, %197 : vector<1x512xf32>
    %209 = arith.addf %185, %208 : vector<1x512xf32>
    %c110 = arith.constant 110 : index
    %210 = memref.load %arg5[%c110] : memref<144xf32, #tpu.memory_space<smem>>
    %211 = vector.broadcast %210 : f32 to vector<1x512xf32>
    %212 = arith.mulf %211, %197 : vector<1x512xf32>
    %213 = arith.addf %189, %212 : vector<1x512xf32>
    %c1_49 = arith.constant 1 : index
    %c0_50 = arith.constant 0 : index
    %214 = vector.load %arg8[%c1_49, %c0_50] : memref<4x512xf32, #tpu.memory_space<vmem>>, vector<1x512xf32>
    %c11 = arith.constant 11 : index
    %215 = memref.load %arg5[%c11] : memref<144xf32, #tpu.memory_space<smem>>
    %216 = vector.broadcast %215 : f32 to vector<1x512xf32>
    %217 = arith.mulf %216, %214 : vector<1x512xf32>
    %218 = arith.addf %201, %217 : vector<1x512xf32>
    %c47 = arith.constant 47 : index
    %219 = memref.load %arg5[%c47] : memref<144xf32, #tpu.memory_space<smem>>
    %220 = vector.broadcast %219 : f32 to vector<1x512xf32>
    %221 = arith.mulf %220, %214 : vector<1x512xf32>
    %222 = arith.addf %205, %221 : vector<1x512xf32>
    %c83 = arith.constant 83 : index
    %223 = memref.load %arg5[%c83] : memref<144xf32, #tpu.memory_space<smem>>
    %224 = vector.broadcast %223 : f32 to vector<1x512xf32>
    %225 = arith.mulf %224, %214 : vector<1x512xf32>
    %226 = arith.addf %209, %225 : vector<1x512xf32>
    %c119 = arith.constant 119 : index
    %227 = memref.load %arg5[%c119] : memref<144xf32, #tpu.memory_space<smem>>
    %228 = vector.broadcast %227 : f32 to vector<1x512xf32>
    %229 = arith.mulf %228, %214 : vector<1x512xf32>
    %230 = arith.addf %213, %229 : vector<1x512xf32>
    %c2_51 = arith.constant 2 : index
    %c0_52 = arith.constant 0 : index
    %231 = vector.load %arg8[%c2_51, %c0_52] : memref<4x512xf32, #tpu.memory_space<vmem>>, vector<1x512xf32>
    %c20 = arith.constant 20 : index
    %232 = memref.load %arg5[%c20] : memref<144xf32, #tpu.memory_space<smem>>
    %233 = vector.broadcast %232 : f32 to vector<1x512xf32>
    %234 = arith.mulf %233, %231 : vector<1x512xf32>
    %235 = arith.addf %218, %234 : vector<1x512xf32>
    %c56 = arith.constant 56 : index
    %236 = memref.load %arg5[%c56] : memref<144xf32, #tpu.memory_space<smem>>
    %237 = vector.broadcast %236 : f32 to vector<1x512xf32>
    %238 = arith.mulf %237, %231 : vector<1x512xf32>
    %239 = arith.addf %222, %238 : vector<1x512xf32>
    %c92 = arith.constant 92 : index
    %240 = memref.load %arg5[%c92] : memref<144xf32, #tpu.memory_space<smem>>
    %241 = vector.broadcast %240 : f32 to vector<1x512xf32>
    %242 = arith.mulf %241, %231 : vector<1x512xf32>
    %243 = arith.addf %226, %242 : vector<1x512xf32>
    %c128 = arith.constant 128 : index
    %244 = memref.load %arg5[%c128] : memref<144xf32, #tpu.memory_space<smem>>
    %245 = vector.broadcast %244 : f32 to vector<1x512xf32>
    %246 = arith.mulf %245, %231 : vector<1x512xf32>
    %247 = arith.addf %230, %246 : vector<1x512xf32>
    %c3_53 = arith.constant 3 : index
    %c0_54 = arith.constant 0 : index
    %248 = vector.load %arg8[%c3_53, %c0_54] : memref<4x512xf32, #tpu.memory_space<vmem>>, vector<1x512xf32>
    %c29 = arith.constant 29 : index
    %249 = memref.load %arg5[%c29] : memref<144xf32, #tpu.memory_space<smem>>
    %250 = vector.broadcast %249 : f32 to vector<1x512xf32>
    %251 = arith.mulf %250, %248 : vector<1x512xf32>
    %252 = arith.addf %235, %251 : vector<1x512xf32>
    %c65 = arith.constant 65 : index
    %253 = memref.load %arg5[%c65] : memref<144xf32, #tpu.memory_space<smem>>
    %254 = vector.broadcast %253 : f32 to vector<1x512xf32>
    %255 = arith.mulf %254, %248 : vector<1x512xf32>
    %256 = arith.addf %239, %255 : vector<1x512xf32>
    %c101 = arith.constant 101 : index
    %257 = memref.load %arg5[%c101] : memref<144xf32, #tpu.memory_space<smem>>
    %258 = vector.broadcast %257 : f32 to vector<1x512xf32>
    %259 = arith.mulf %258, %248 : vector<1x512xf32>
    %260 = arith.addf %243, %259 : vector<1x512xf32>
    %c137 = arith.constant 137 : index
    %261 = memref.load %arg5[%c137] : memref<144xf32, #tpu.memory_space<smem>>
    %262 = vector.broadcast %261 : f32 to vector<1x512xf32>
    %263 = arith.mulf %262, %248 : vector<1x512xf32>
    %264 = arith.addf %247, %263 : vector<1x512xf32>
    %c1_i32_55 = arith.constant 1 : i32
    %265 = tpu.dynamic_rotate %26 by %c1_i32_55 dim 1 : vector<4x512xf32>, i32 -> vector<4x512xf32>
    %cst_56 = arith.constant 0.000000e+00 : f32
    %266 = vector.shape_cast %36 : vector<1x512xi1> to vector<1x512xi1>
    %267 = vector.broadcast %266 : vector<1x512xi1> to vector<4x512xi1>
    %268 = vector.broadcast %cst_56 : f32 to vector<4x512xf32>
    %269 = arith.select %267, %265, %268 : vector<4x512xi1>, vector<4x512xf32>
    %c0_57 = arith.constant 0 : index
    %c0_58 = arith.constant 0 : index
    %270 = vector.load %arg8[%c0_57, %c0_58] : memref<4x512xf32, #tpu.memory_space<vmem>>, vector<4x512xf32>
    tpu.vector_store %arg8[%c0_57, %c0_58], %269 {strides = array<i32>} : memref<4x512xf32, #tpu.memory_space<vmem>>, vector<4x512xf32>,
    %c0_59 = arith.constant 0 : index
    %c0_60 = arith.constant 0 : index
    %271 = vector.load %arg8[%c0_59, %c0_60] : memref<4x512xf32, #tpu.memory_space<vmem>>, vector<1x512xf32>
    %c3_61 = arith.constant 3 : index
    %272 = memref.load %arg5[%c3_61] : memref<144xf32, #tpu.memory_space<smem>>
    %273 = vector.broadcast %272 : f32 to vector<1x512xf32>
    %274 = arith.mulf %273, %271 : vector<1x512xf32>
    %275 = arith.addf %252, %274 : vector<1x512xf32>
    %c39 = arith.constant 39 : index
    %276 = memref.load %arg5[%c39] : memref<144xf32, #tpu.memory_space<smem>>
    %277 = vector.broadcast %276 : f32 to vector<1x512xf32>
    %278 = arith.mulf %277, %271 : vector<1x512xf32>
    %279 = arith.addf %256, %278 : vector<1x512xf32>
    %c75 = arith.constant 75 : index
    %280 = memref.load %arg5[%c75] : memref<144xf32, #tpu.memory_space<smem>>
    %281 = vector.broadcast %280 : f32 to vector<1x512xf32>
    %282 = arith.mulf %281, %271 : vector<1x512xf32>
    %283 = arith.addf %260, %282 : vector<1x512xf32>
    %c111 = arith.constant 111 : index
    %284 = memref.load %arg5[%c111] : memref<144xf32, #tpu.memory_space<smem>>
    %285 = vector.broadcast %284 : f32 to vector<1x512xf32>
    %286 = arith.mulf %285, %271 : vector<1x512xf32>
    %287 = arith.addf %264, %286 : vector<1x512xf32>
    %c1_62 = arith.constant 1 : index
    %c0_63 = arith.constant 0 : index
    %288 = vector.load %arg8[%c1_62, %c0_63] : memref<4x512xf32, #tpu.memory_space<vmem>>, vector<1x512xf32>
    %c12 = arith.constant 12 : index
    %289 = memref.load %arg5[%c12] : memref<144xf32, #tpu.memory_space<smem>>
    %290 = vector.broadcast %289 : f32 to vector<1x512xf32>
    %291 = arith.mulf %290, %288 : vector<1x512xf32>
    %292 = arith.addf %275, %291 : vector<1x512xf32>
    %c48 = arith.constant 48 : index
    %293 = memref.load %arg5[%c48] : memref<144xf32, #tpu.memory_space<smem>>
    %294 = vector.broadcast %293 : f32 to vector<1x512xf32>
    %295 = arith.mulf %294, %288 : vector<1x512xf32>
    %296 = arith.addf %279, %295 : vector<1x512xf32>
    %c84 = arith.constant 84 : index
    %297 = memref.load %arg5[%c84] : memref<144xf32, #tpu.memory_space<smem>>
    %298 = vector.broadcast %297 : f32 to vector<1x512xf32>
    %299 = arith.mulf %298, %288 : vector<1x512xf32>
    %300 = arith.addf %283, %299 : vector<1x512xf32>
    %c120 = arith.constant 120 : index
    %301 = memref.load %arg5[%c120] : memref<144xf32, #tpu.memory_space<smem>>
    %302 = vector.broadcast %301 : f32 to vector<1x512xf32>
    %303 = arith.mulf %302, %288 : vector<1x512xf32>
    %304 = arith.addf %287, %303 : vector<1x512xf32>
    %c2_64 = arith.constant 2 : index
    %c0_65 = arith.constant 0 : index
    %305 = vector.load %arg8[%c2_64, %c0_65] : memref<4x512xf32, #tpu.memory_space<vmem>>, vector<1x512xf32>
    %c21 = arith.constant 21 : index
    %306 = memref.load %arg5[%c21] : memref<144xf32, #tpu.memory_space<smem>>
    %307 = vector.broadcast %306 : f32 to vector<1x512xf32>
    %308 = arith.mulf %307, %305 : vector<1x512xf32>
    %309 = arith.addf %292, %308 : vector<1x512xf32>
    %c57 = arith.constant 57 : index
    %310 = memref.load %arg5[%c57] : memref<144xf32, #tpu.memory_space<smem>>
    %311 = vector.broadcast %310 : f32 to vector<1x512xf32>
    %312 = arith.mulf %311, %305 : vector<1x512xf32>
    %313 = arith.addf %296, %312 : vector<1x512xf32>
    %c93 = arith.constant 93 : index
    %314 = memref.load %arg5[%c93] : memref<144xf32, #tpu.memory_space<smem>>
    %315 = vector.broadcast %314 : f32 to vector<1x512xf32>
    %316 = arith.mulf %315, %305 : vector<1x512xf32>
    %317 = arith.addf %300, %316 : vector<1x512xf32>
    %c129 = arith.constant 129 : index
    %318 = memref.load %arg5[%c129] : memref<144xf32, #tpu.memory_space<smem>>
    %319 = vector.broadcast %318 : f32 to vector<1x512xf32>
    %320 = arith.mulf %319, %305 : vector<1x512xf32>
    %321 = arith.addf %304, %320 : vector<1x512xf32>
    %c3_66 = arith.constant 3 : index
    %c0_67 = arith.constant 0 : index
    %322 = vector.load %arg8[%c3_66, %c0_67] : memref<4x512xf32, #tpu.memory_space<vmem>>, vector<1x512xf32>
    %c30 = arith.constant 30 : index
    %323 = memref.load %arg5[%c30] : memref<144xf32, #tpu.memory_space<smem>>
    %324 = vector.broadcast %323 : f32 to vector<1x512xf32>
    %325 = arith.mulf %324, %322 : vector<1x512xf32>
    %326 = arith.addf %309, %325 : vector<1x512xf32>
    %c66 = arith.constant 66 : index
    %327 = memref.load %arg5[%c66] : memref<144xf32, #tpu.memory_space<smem>>
    %328 = vector.broadcast %327 : f32 to vector<1x512xf32>
    %329 = arith.mulf %328, %322 : vector<1x512xf32>
    %330 = arith.addf %313, %329 : vector<1x512xf32>
    %c102 = arith.constant 102 : index
    %331 = memref.load %arg5[%c102] : memref<144xf32, #tpu.memory_space<smem>>
    %332 = vector.broadcast %331 : f32 to vector<1x512xf32>
    %333 = arith.mulf %332, %322 : vector<1x512xf32>
    %334 = arith.addf %317, %333 : vector<1x512xf32>
    %c138 = arith.constant 138 : index
    %335 = memref.load %arg5[%c138] : memref<144xf32, #tpu.memory_space<smem>>
    %336 = vector.broadcast %335 : f32 to vector<1x512xf32>
    %337 = arith.mulf %336, %322 : vector<1x512xf32>
    %338 = arith.addf %321, %337 : vector<1x512xf32>
    %c0_68 = arith.constant 0 : index
    %c0_69 = arith.constant 0 : index
    %339 = vector.load %arg8[%c0_68, %c0_69] : memref<4x512xf32, #tpu.memory_space<vmem>>, vector<4x512xf32>
    tpu.vector_store %arg8[%c0_68, %c0_69], %26 {strides = array<i32>} : memref<4x512xf32, #tpu.memory_space<vmem>>, vector<4x512xf32>,
    %c0_70 = arith.constant 0 : index
    %c0_71 = arith.constant 0 : index
    %340 = vector.load %arg8[%c0_70, %c0_71] : memref<4x512xf32, #tpu.memory_space<vmem>>, vector<1x512xf32>
    %c4 = arith.constant 4 : index
    %341 = memref.load %arg5[%c4] : memref<144xf32, #tpu.memory_space<smem>>
    %342 = vector.broadcast %341 : f32 to vector<1x512xf32>
    %343 = arith.mulf %342, %340 : vector<1x512xf32>
    %344 = arith.addf %326, %343 : vector<1x512xf32>
    %c40 = arith.constant 40 : index
    %345 = memref.load %arg5[%c40] : memref<144xf32, #tpu.memory_space<smem>>
    %346 = vector.broadcast %345 : f32 to vector<1x512xf32>
    %347 = arith.mulf %346, %340 : vector<1x512xf32>
    %348 = arith.addf %330, %347 : vector<1x512xf32>
    %c76 = arith.constant 76 : index
    %349 = memref.load %arg5[%c76] : memref<144xf32, #tpu.memory_space<smem>>
    %350 = vector.broadcast %349 : f32 to vector<1x512xf32>
    %351 = arith.mulf %350, %340 : vector<1x512xf32>
    %352 = arith.addf %334, %351 : vector<1x512xf32>
    %c112 = arith.constant 112 : index
    %353 = memref.load %arg5[%c112] : memref<144xf32, #tpu.memory_space<smem>>
    %354 = vector.broadcast %353 : f32 to vector<1x512xf32>
    %355 = arith.mulf %354, %340 : vector<1x512xf32>
    %356 = arith.addf %338, %355 : vector<1x512xf32>
    %c1_72 = arith.constant 1 : index
    %c0_73 = arith.constant 0 : index
    %357 = vector.load %arg8[%c1_72, %c0_73] : memref<4x512xf32, #tpu.memory_space<vmem>>, vector<1x512xf32>
    %c13 = arith.constant 13 : index
    %358 = memref.load %arg5[%c13] : memref<144xf32, #tpu.memory_space<smem>>
    %359 = vector.broadcast %358 : f32 to vector<1x512xf32>
    %360 = arith.mulf %359, %357 : vector<1x512xf32>
    %361 = arith.addf %344, %360 : vector<1x512xf32>
    %c49 = arith.constant 49 : index
    %362 = memref.load %arg5[%c49] : memref<144xf32, #tpu.memory_space<smem>>
    %363 = vector.broadcast %362 : f32 to vector<1x512xf32>
    %364 = arith.mulf %363, %357 : vector<1x512xf32>
    %365 = arith.addf %348, %364 : vector<1x512xf32>
    %c85 = arith.constant 85 : index
    %366 = memref.load %arg5[%c85] : memref<144xf32, #tpu.memory_space<smem>>
    %367 = vector.broadcast %366 : f32 to vector<1x512xf32>
    %368 = arith.mulf %367, %357 : vector<1x512xf32>
    %369 = arith.addf %352, %368 : vector<1x512xf32>
    %c121 = arith.constant 121 : index
    %370 = memref.load %arg5[%c121] : memref<144xf32, #tpu.memory_space<smem>>
    %371 = vector.broadcast %370 : f32 to vector<1x512xf32>
    %372 = arith.mulf %371, %357 : vector<1x512xf32>
    %373 = arith.addf %356, %372 : vector<1x512xf32>
    %c2_74 = arith.constant 2 : index
    %c0_75 = arith.constant 0 : index
    %374 = vector.load %arg8[%c2_74, %c0_75] : memref<4x512xf32, #tpu.memory_space<vmem>>, vector<1x512xf32>
    %c22 = arith.constant 22 : index
    %375 = memref.load %arg5[%c22] : memref<144xf32, #tpu.memory_space<smem>>
    %376 = vector.broadcast %375 : f32 to vector<1x512xf32>
    %377 = arith.mulf %376, %374 : vector<1x512xf32>
    %378 = arith.addf %361, %377 : vector<1x512xf32>
    %c58 = arith.constant 58 : index
    %379 = memref.load %arg5[%c58] : memref<144xf32, #tpu.memory_space<smem>>
    %380 = vector.broadcast %379 : f32 to vector<1x512xf32>
    %381 = arith.mulf %380, %374 : vector<1x512xf32>
    %382 = arith.addf %365, %381 : vector<1x512xf32>
    %c94 = arith.constant 94 : index
    %383 = memref.load %arg5[%c94] : memref<144xf32, #tpu.memory_space<smem>>
    %384 = vector.broadcast %383 : f32 to vector<1x512xf32>
    %385 = arith.mulf %384, %374 : vector<1x512xf32>
    %386 = arith.addf %369, %385 : vector<1x512xf32>
    %c130 = arith.constant 130 : index
    %387 = memref.load %arg5[%c130] : memref<144xf32, #tpu.memory_space<smem>>
    %388 = vector.broadcast %387 : f32 to vector<1x512xf32>
    %389 = arith.mulf %388, %374 : vector<1x512xf32>
    %390 = arith.addf %373, %389 : vector<1x512xf32>
    %c3_76 = arith.constant 3 : index
    %c0_77 = arith.constant 0 : index
    %391 = vector.load %arg8[%c3_76, %c0_77] : memref<4x512xf32, #tpu.memory_space<vmem>>, vector<1x512xf32>
    %c31 = arith.constant 31 : index
    %392 = memref.load %arg5[%c31] : memref<144xf32, #tpu.memory_space<smem>>
    %393 = vector.broadcast %392 : f32 to vector<1x512xf32>
    %394 = arith.mulf %393, %391 : vector<1x512xf32>
    %395 = arith.addf %378, %394 : vector<1x512xf32>
    %c67 = arith.constant 67 : index
    %396 = memref.load %arg5[%c67] : memref<144xf32, #tpu.memory_space<smem>>
    %397 = vector.broadcast %396 : f32 to vector<1x512xf32>
    %398 = arith.mulf %397, %391 : vector<1x512xf32>
    %399 = arith.addf %382, %398 : vector<1x512xf32>
    %c103 = arith.constant 103 : index
    %400 = memref.load %arg5[%c103] : memref<144xf32, #tpu.memory_space<smem>>
    %401 = vector.broadcast %400 : f32 to vector<1x512xf32>
    %402 = arith.mulf %401, %391 : vector<1x512xf32>
    %403 = arith.addf %386, %402 : vector<1x512xf32>
    %c139 = arith.constant 139 : index
    %404 = memref.load %arg5[%c139] : memref<144xf32, #tpu.memory_space<smem>>
    %405 = vector.broadcast %404 : f32 to vector<1x512xf32>
    %406 = arith.mulf %405, %391 : vector<1x512xf32>
    %407 = arith.addf %390, %406 : vector<1x512xf32>
    %c511_i32 = arith.constant 511 : i32
    %408 = tpu.dynamic_rotate %26 by %c511_i32 dim 1 : vector<4x512xf32>, i32 -> vector<4x512xf32>
    %cst_78 = arith.constant 0.000000e+00 : f32
    %409 = vector.shape_cast %34 : vector<1x512xi1> to vector<1x512xi1>
    %410 = vector.broadcast %409 : vector<1x512xi1> to vector<4x512xi1>
    %411 = vector.broadcast %cst_78 : f32 to vector<4x512xf32>
    %412 = arith.select %410, %408, %411 : vector<4x512xi1>, vector<4x512xf32>
    %c0_79 = arith.constant 0 : index
    %c0_80 = arith.constant 0 : index
    %413 = vector.load %arg8[%c0_79, %c0_80] : memref<4x512xf32, #tpu.memory_space<vmem>>, vector<4x512xf32>
    tpu.vector_store %arg8[%c0_79, %c0_80], %412 {strides = array<i32>} : memref<4x512xf32, #tpu.memory_space<vmem>>, vector<4x512xf32>,
    %c0_81 = arith.constant 0 : index
    %c0_82 = arith.constant 0 : index
    %414 = vector.load %arg8[%c0_81, %c0_82] : memref<4x512xf32, #tpu.memory_space<vmem>>, vector<1x512xf32>
    %c5 = arith.constant 5 : index
    %415 = memref.load %arg5[%c5] : memref<144xf32, #tpu.memory_space<smem>>
    %416 = vector.broadcast %415 : f32 to vector<1x512xf32>
    %417 = arith.mulf %416, %414 : vector<1x512xf32>
    %418 = arith.addf %395, %417 : vector<1x512xf32>
    %c41 = arith.constant 41 : index
    %419 = memref.load %arg5[%c41] : memref<144xf32, #tpu.memory_space<smem>>
    %420 = vector.broadcast %419 : f32 to vector<1x512xf32>
    %421 = arith.mulf %420, %414 : vector<1x512xf32>
    %422 = arith.addf %399, %421 : vector<1x512xf32>
    %c77 = arith.constant 77 : index
    %423 = memref.load %arg5[%c77] : memref<144xf32, #tpu.memory_space<smem>>
    %424 = vector.broadcast %423 : f32 to vector<1x512xf32>
    %425 = arith.mulf %424, %414 : vector<1x512xf32>
    %426 = arith.addf %403, %425 : vector<1x512xf32>
    %c113 = arith.constant 113 : index
    %427 = memref.load %arg5[%c113] : memref<144xf32, #tpu.memory_space<smem>>
    %428 = vector.broadcast %427 : f32 to vector<1x512xf32>
    %429 = arith.mulf %428, %414 : vector<1x512xf32>
    %430 = arith.addf %407, %429 : vector<1x512xf32>
    %c1_83 = arith.constant 1 : index
    %c0_84 = arith.constant 0 : index
    %431 = vector.load %arg8[%c1_83, %c0_84] : memref<4x512xf32, #tpu.memory_space<vmem>>, vector<1x512xf32>
    %c14 = arith.constant 14 : index
    %432 = memref.load %arg5[%c14] : memref<144xf32, #tpu.memory_space<smem>>
    %433 = vector.broadcast %432 : f32 to vector<1x512xf32>
    %434 = arith.mulf %433, %431 : vector<1x512xf32>
    %435 = arith.addf %418, %434 : vector<1x512xf32>
    %c50 = arith.constant 50 : index
    %436 = memref.load %arg5[%c50] : memref<144xf32, #tpu.memory_space<smem>>
    %437 = vector.broadcast %436 : f32 to vector<1x512xf32>
    %438 = arith.mulf %437, %431 : vector<1x512xf32>
    %439 = arith.addf %422, %438 : vector<1x512xf32>
    %c86 = arith.constant 86 : index
    %440 = memref.load %arg5[%c86] : memref<144xf32, #tpu.memory_space<smem>>
    %441 = vector.broadcast %440 : f32 to vector<1x512xf32>
    %442 = arith.mulf %441, %431 : vector<1x512xf32>
    %443 = arith.addf %426, %442 : vector<1x512xf32>
    %c122 = arith.constant 122 : index
    %444 = memref.load %arg5[%c122] : memref<144xf32, #tpu.memory_space<smem>>
    %445 = vector.broadcast %444 : f32 to vector<1x512xf32>
    %446 = arith.mulf %445, %431 : vector<1x512xf32>
    %447 = arith.addf %430, %446 : vector<1x512xf32>
    %c2_85 = arith.constant 2 : index
    %c0_86 = arith.constant 0 : index
    %448 = vector.load %arg8[%c2_85, %c0_86] : memref<4x512xf32, #tpu.memory_space<vmem>>, vector<1x512xf32>
    %c23 = arith.constant 23 : index
    %449 = memref.load %arg5[%c23] : memref<144xf32, #tpu.memory_space<smem>>
    %450 = vector.broadcast %449 : f32 to vector<1x512xf32>
    %451 = arith.mulf %450, %448 : vector<1x512xf32>
    %452 = arith.addf %435, %451 : vector<1x512xf32>
    %c59 = arith.constant 59 : index
    %453 = memref.load %arg5[%c59] : memref<144xf32, #tpu.memory_space<smem>>
    %454 = vector.broadcast %453 : f32 to vector<1x512xf32>
    %455 = arith.mulf %454, %448 : vector<1x512xf32>
    %456 = arith.addf %439, %455 : vector<1x512xf32>
    %c95 = arith.constant 95 : index
    %457 = memref.load %arg5[%c95] : memref<144xf32, #tpu.memory_space<smem>>
    %458 = vector.broadcast %457 : f32 to vector<1x512xf32>
    %459 = arith.mulf %458, %448 : vector<1x512xf32>
    %460 = arith.addf %443, %459 : vector<1x512xf32>
    %c131 = arith.constant 131 : index
    %461 = memref.load %arg5[%c131] : memref<144xf32, #tpu.memory_space<smem>>
    %462 = vector.broadcast %461 : f32 to vector<1x512xf32>
    %463 = arith.mulf %462, %448 : vector<1x512xf32>
    %464 = arith.addf %447, %463 : vector<1x512xf32>
    %c3_87 = arith.constant 3 : index
    %c0_88 = arith.constant 0 : index
    %465 = vector.load %arg8[%c3_87, %c0_88] : memref<4x512xf32, #tpu.memory_space<vmem>>, vector<1x512xf32>
    %c32 = arith.constant 32 : index
    %466 = memref.load %arg5[%c32] : memref<144xf32, #tpu.memory_space<smem>>
    %467 = vector.broadcast %466 : f32 to vector<1x512xf32>
    %468 = arith.mulf %467, %465 : vector<1x512xf32>
    %469 = arith.addf %452, %468 : vector<1x512xf32>
    %c68 = arith.constant 68 : index
    %470 = memref.load %arg5[%c68] : memref<144xf32, #tpu.memory_space<smem>>
    %471 = vector.broadcast %470 : f32 to vector<1x512xf32>
    %472 = arith.mulf %471, %465 : vector<1x512xf32>
    %473 = arith.addf %456, %472 : vector<1x512xf32>
    %c104 = arith.constant 104 : index
    %474 = memref.load %arg5[%c104] : memref<144xf32, #tpu.memory_space<smem>>
    %475 = vector.broadcast %474 : f32 to vector<1x512xf32>
    %476 = arith.mulf %475, %465 : vector<1x512xf32>
    %477 = arith.addf %460, %476 : vector<1x512xf32>
    %c140 = arith.constant 140 : index
    %478 = memref.load %arg5[%c140] : memref<144xf32, #tpu.memory_space<smem>>
    %479 = vector.broadcast %478 : f32 to vector<1x512xf32>
    %480 = arith.mulf %479, %465 : vector<1x512xf32>
    %481 = arith.addf %464, %480 : vector<1x512xf32>
    %c497_i32 = arith.constant 497 : i32
    %482 = tpu.dynamic_rotate %26 by %c497_i32 dim 1 : vector<4x512xf32>, i32 -> vector<4x512xf32>
    %483 = arith.andi %30, %36 : vector<1x512xi1>
    %cst_89 = arith.constant 0.000000e+00 : f32
    %484 = vector.shape_cast %483 : vector<1x512xi1> to vector<1x512xi1>
    %485 = vector.broadcast %484 : vector<1x512xi1> to vector<4x512xi1>
    %486 = vector.broadcast %cst_89 : f32 to vector<4x512xf32>
    %487 = arith.select %485, %482, %486 : vector<4x512xi1>, vector<4x512xf32>
    %c0_90 = arith.constant 0 : index
    %c0_91 = arith.constant 0 : index
    %488 = vector.load %arg8[%c0_90, %c0_91] : memref<4x512xf32, #tpu.memory_space<vmem>>, vector<4x512xf32>
    tpu.vector_store %arg8[%c0_90, %c0_91], %487 {strides = array<i32>} : memref<4x512xf32, #tpu.memory_space<vmem>>, vector<4x512xf32>,
    %c0_92 = arith.constant 0 : index
    %c0_93 = arith.constant 0 : index
    %489 = vector.load %arg8[%c0_92, %c0_93] : memref<4x512xf32, #tpu.memory_space<vmem>>, vector<1x512xf32>
    %c6 = arith.constant 6 : index
    %490 = memref.load %arg5[%c6] : memref<144xf32, #tpu.memory_space<smem>>
    %491 = vector.broadcast %490 : f32 to vector<1x512xf32>
    %492 = arith.mulf %491, %489 : vector<1x512xf32>
    %493 = arith.addf %469, %492 : vector<1x512xf32>
    %c42 = arith.constant 42 : index
    %494 = memref.load %arg5[%c42] : memref<144xf32, #tpu.memory_space<smem>>
    %495 = vector.broadcast %494 : f32 to vector<1x512xf32>
    %496 = arith.mulf %495, %489 : vector<1x512xf32>
    %497 = arith.addf %473, %496 : vector<1x512xf32>
    %c78 = arith.constant 78 : index
    %498 = memref.load %arg5[%c78] : memref<144xf32, #tpu.memory_space<smem>>
    %499 = vector.broadcast %498 : f32 to vector<1x512xf32>
    %500 = arith.mulf %499, %489 : vector<1x512xf32>
    %501 = arith.addf %477, %500 : vector<1x512xf32>
    %c114 = arith.constant 114 : index
    %502 = memref.load %arg5[%c114] : memref<144xf32, #tpu.memory_space<smem>>
    %503 = vector.broadcast %502 : f32 to vector<1x512xf32>
    %504 = arith.mulf %503, %489 : vector<1x512xf32>
    %505 = arith.addf %481, %504 : vector<1x512xf32>
    %c1_94 = arith.constant 1 : index
    %c0_95 = arith.constant 0 : index
    %506 = vector.load %arg8[%c1_94, %c0_95] : memref<4x512xf32, #tpu.memory_space<vmem>>, vector<1x512xf32>
    %c15 = arith.constant 15 : index
    %507 = memref.load %arg5[%c15] : memref<144xf32, #tpu.memory_space<smem>>
    %508 = vector.broadcast %507 : f32 to vector<1x512xf32>
    %509 = arith.mulf %508, %506 : vector<1x512xf32>
    %510 = arith.addf %493, %509 : vector<1x512xf32>
    %c51 = arith.constant 51 : index
    %511 = memref.load %arg5[%c51] : memref<144xf32, #tpu.memory_space<smem>>
    %512 = vector.broadcast %511 : f32 to vector<1x512xf32>
    %513 = arith.mulf %512, %506 : vector<1x512xf32>
    %514 = arith.addf %497, %513 : vector<1x512xf32>
    %c87 = arith.constant 87 : index
    %515 = memref.load %arg5[%c87] : memref<144xf32, #tpu.memory_space<smem>>
    %516 = vector.broadcast %515 : f32 to vector<1x512xf32>
    %517 = arith.mulf %516, %506 : vector<1x512xf32>
    %518 = arith.addf %501, %517 : vector<1x512xf32>
    %c123 = arith.constant 123 : index
    %519 = memref.load %arg5[%c123] : memref<144xf32, #tpu.memory_space<smem>>
    %520 = vector.broadcast %519 : f32 to vector<1x512xf32>
    %521 = arith.mulf %520, %506 : vector<1x512xf32>
    %522 = arith.addf %505, %521 : vector<1x512xf32>
    %c2_96 = arith.constant 2 : index
    %c0_97 = arith.constant 0 : index
    %523 = vector.load %arg8[%c2_96, %c0_97] : memref<4x512xf32, #tpu.memory_space<vmem>>, vector<1x512xf32>
    %c24 = arith.constant 24 : index
    %524 = memref.load %arg5[%c24] : memref<144xf32, #tpu.memory_space<smem>>
    %525 = vector.broadcast %524 : f32 to vector<1x512xf32>
    %526 = arith.mulf %525, %523 : vector<1x512xf32>
    %527 = arith.addf %510, %526 : vector<1x512xf32>
    %c60 = arith.constant 60 : index
    %528 = memref.load %arg5[%c60] : memref<144xf32, #tpu.memory_space<smem>>
    %529 = vector.broadcast %528 : f32 to vector<1x512xf32>
    %530 = arith.mulf %529, %523 : vector<1x512xf32>
    %531 = arith.addf %514, %530 : vector<1x512xf32>
    %c96 = arith.constant 96 : index
    %532 = memref.load %arg5[%c96] : memref<144xf32, #tpu.memory_space<smem>>
    %533 = vector.broadcast %532 : f32 to vector<1x512xf32>
    %534 = arith.mulf %533, %523 : vector<1x512xf32>
    %535 = arith.addf %518, %534 : vector<1x512xf32>
    %c132 = arith.constant 132 : index
    %536 = memref.load %arg5[%c132] : memref<144xf32, #tpu.memory_space<smem>>
    %537 = vector.broadcast %536 : f32 to vector<1x512xf32>
    %538 = arith.mulf %537, %523 : vector<1x512xf32>
    %539 = arith.addf %522, %538 : vector<1x512xf32>
    %c3_98 = arith.constant 3 : index
    %c0_99 = arith.constant 0 : index
    %540 = vector.load %arg8[%c3_98, %c0_99] : memref<4x512xf32, #tpu.memory_space<vmem>>, vector<1x512xf32>
    %c33 = arith.constant 33 : index
    %541 = memref.load %arg5[%c33] : memref<144xf32, #tpu.memory_space<smem>>
    %542 = vector.broadcast %541 : f32 to vector<1x512xf32>
    %543 = arith.mulf %542, %540 : vector<1x512xf32>
    %544 = arith.addf %527, %543 : vector<1x512xf32>
    %c69 = arith.constant 69 : index
    %545 = memref.load %arg5[%c69] : memref<144xf32, #tpu.memory_space<smem>>
    %546 = vector.broadcast %545 : f32 to vector<1x512xf32>
    %547 = arith.mulf %546, %540 : vector<1x512xf32>
    %548 = arith.addf %531, %547 : vector<1x512xf32>
    %c105 = arith.constant 105 : index
    %549 = memref.load %arg5[%c105] : memref<144xf32, #tpu.memory_space<smem>>
    %550 = vector.broadcast %549 : f32 to vector<1x512xf32>
    %551 = arith.mulf %550, %540 : vector<1x512xf32>
    %552 = arith.addf %535, %551 : vector<1x512xf32>
    %c141 = arith.constant 141 : index
    %553 = memref.load %arg5[%c141] : memref<144xf32, #tpu.memory_space<smem>>
    %554 = vector.broadcast %553 : f32 to vector<1x512xf32>
    %555 = arith.mulf %554, %540 : vector<1x512xf32>
    %556 = arith.addf %539, %555 : vector<1x512xf32>
    %c496_i32 = arith.constant 496 : i32
    %557 = tpu.dynamic_rotate %26 by %c496_i32 dim 1 : vector<4x512xf32>, i32 -> vector<4x512xf32>
    %cst_100 = arith.constant 0.000000e+00 : f32
    %558 = vector.shape_cast %30 : vector<1x512xi1> to vector<1x512xi1>
    %559 = vector.broadcast %558 : vector<1x512xi1> to vector<4x512xi1>
    %560 = vector.broadcast %cst_100 : f32 to vector<4x512xf32>
    %561 = arith.select %559, %557, %560 : vector<4x512xi1>, vector<4x512xf32>
    %c0_101 = arith.constant 0 : index
    %c0_102 = arith.constant 0 : index
    %562 = vector.load %arg8[%c0_101, %c0_102] : memref<4x512xf32, #tpu.memory_space<vmem>>, vector<4x512xf32>
    tpu.vector_store %arg8[%c0_101, %c0_102], %561 {strides = array<i32>} : memref<4x512xf32, #tpu.memory_space<vmem>>, vector<4x512xf32>,
    %c0_103 = arith.constant 0 : index
    %c0_104 = arith.constant 0 : index
    %563 = vector.load %arg8[%c0_103, %c0_104] : memref<4x512xf32, #tpu.memory_space<vmem>>, vector<1x512xf32>
    %c7 = arith.constant 7 : index
    %564 = memref.load %arg5[%c7] : memref<144xf32, #tpu.memory_space<smem>>
    %565 = vector.broadcast %564 : f32 to vector<1x512xf32>
    %566 = arith.mulf %565, %563 : vector<1x512xf32>
    %567 = arith.addf %544, %566 : vector<1x512xf32>
    %c43 = arith.constant 43 : index
    %568 = memref.load %arg5[%c43] : memref<144xf32, #tpu.memory_space<smem>>
    %569 = vector.broadcast %568 : f32 to vector<1x512xf32>
    %570 = arith.mulf %569, %563 : vector<1x512xf32>
    %571 = arith.addf %548, %570 : vector<1x512xf32>
    %c79 = arith.constant 79 : index
    %572 = memref.load %arg5[%c79] : memref<144xf32, #tpu.memory_space<smem>>
    %573 = vector.broadcast %572 : f32 to vector<1x512xf32>
    %574 = arith.mulf %573, %563 : vector<1x512xf32>
    %575 = arith.addf %552, %574 : vector<1x512xf32>
    %c115 = arith.constant 115 : index
    %576 = memref.load %arg5[%c115] : memref<144xf32, #tpu.memory_space<smem>>
    %577 = vector.broadcast %576 : f32 to vector<1x512xf32>
    %578 = arith.mulf %577, %563 : vector<1x512xf32>
    %579 = arith.addf %556, %578 : vector<1x512xf32>
    %c1_105 = arith.constant 1 : index
    %c0_106 = arith.constant 0 : index
    %580 = vector.load %arg8[%c1_105, %c0_106] : memref<4x512xf32, #tpu.memory_space<vmem>>, vector<1x512xf32>
    %c16 = arith.constant 16 : index
    %581 = memref.load %arg5[%c16] : memref<144xf32, #tpu.memory_space<smem>>
    %582 = vector.broadcast %581 : f32 to vector<1x512xf32>
    %583 = arith.mulf %582, %580 : vector<1x512xf32>
    %584 = arith.addf %567, %583 : vector<1x512xf32>
    %c52 = arith.constant 52 : index
    %585 = memref.load %arg5[%c52] : memref<144xf32, #tpu.memory_space<smem>>
    %586 = vector.broadcast %585 : f32 to vector<1x512xf32>
    %587 = arith.mulf %586, %580 : vector<1x512xf32>
    %588 = arith.addf %571, %587 : vector<1x512xf32>
    %c88 = arith.constant 88 : index
    %589 = memref.load %arg5[%c88] : memref<144xf32, #tpu.memory_space<smem>>
    %590 = vector.broadcast %589 : f32 to vector<1x512xf32>
    %591 = arith.mulf %590, %580 : vector<1x512xf32>
    %592 = arith.addf %575, %591 : vector<1x512xf32>
    %c124 = arith.constant 124 : index
    %593 = memref.load %arg5[%c124] : memref<144xf32, #tpu.memory_space<smem>>
    %594 = vector.broadcast %593 : f32 to vector<1x512xf32>
    %595 = arith.mulf %594, %580 : vector<1x512xf32>
    %596 = arith.addf %579, %595 : vector<1x512xf32>
    %c2_107 = arith.constant 2 : index
    %c0_108 = arith.constant 0 : index
    %597 = vector.load %arg8[%c2_107, %c0_108] : memref<4x512xf32, #tpu.memory_space<vmem>>, vector<1x512xf32>
    %c25 = arith.constant 25 : index
    %598 = memref.load %arg5[%c25] : memref<144xf32, #tpu.memory_space<smem>>
    %599 = vector.broadcast %598 : f32 to vector<1x512xf32>
    %600 = arith.mulf %599, %597 : vector<1x512xf32>
    %601 = arith.addf %584, %600 : vector<1x512xf32>
    %c61 = arith.constant 61 : index
    %602 = memref.load %arg5[%c61] : memref<144xf32, #tpu.memory_space<smem>>
    %603 = vector.broadcast %602 : f32 to vector<1x512xf32>
    %604 = arith.mulf %603, %597 : vector<1x512xf32>
    %605 = arith.addf %588, %604 : vector<1x512xf32>
    %c97 = arith.constant 97 : index
    %606 = memref.load %arg5[%c97] : memref<144xf32, #tpu.memory_space<smem>>
    %607 = vector.broadcast %606 : f32 to vector<1x512xf32>
    %608 = arith.mulf %607, %597 : vector<1x512xf32>
    %609 = arith.addf %592, %608 : vector<1x512xf32>
    %c133 = arith.constant 133 : index
    %610 = memref.load %arg5[%c133] : memref<144xf32, #tpu.memory_space<smem>>
    %611 = vector.broadcast %610 : f32 to vector<1x512xf32>
    %612 = arith.mulf %611, %597 : vector<1x512xf32>
    %613 = arith.addf %596, %612 : vector<1x512xf32>
    %c3_109 = arith.constant 3 : index
    %c0_110 = arith.constant 0 : index
    %614 = vector.load %arg8[%c3_109, %c0_110] : memref<4x512xf32, #tpu.memory_space<vmem>>, vector<1x512xf32>
    %c34 = arith.constant 34 : index
    %615 = memref.load %arg5[%c34] : memref<144xf32, #tpu.memory_space<smem>>
    %616 = vector.broadcast %615 : f32 to vector<1x512xf32>
    %617 = arith.mulf %616, %614 : vector<1x512xf32>
    %618 = arith.addf %601, %617 : vector<1x512xf32>
    %c70 = arith.constant 70 : index
    %619 = memref.load %arg5[%c70] : memref<144xf32, #tpu.memory_space<smem>>
    %620 = vector.broadcast %619 : f32 to vector<1x512xf32>
    %621 = arith.mulf %620, %614 : vector<1x512xf32>
    %622 = arith.addf %605, %621 : vector<1x512xf32>
    %c106 = arith.constant 106 : index
    %623 = memref.load %arg5[%c106] : memref<144xf32, #tpu.memory_space<smem>>
    %624 = vector.broadcast %623 : f32 to vector<1x512xf32>
    %625 = arith.mulf %624, %614 : vector<1x512xf32>
    %626 = arith.addf %609, %625 : vector<1x512xf32>
    %c142 = arith.constant 142 : index
    %627 = memref.load %arg5[%c142] : memref<144xf32, #tpu.memory_space<smem>>
    %628 = vector.broadcast %627 : f32 to vector<1x512xf32>
    %629 = arith.mulf %628, %614 : vector<1x512xf32>
    %630 = arith.addf %613, %629 : vector<1x512xf32>
    %c495_i32 = arith.constant 495 : i32
    %631 = tpu.dynamic_rotate %26 by %c495_i32 dim 1 : vector<4x512xf32>, i32 -> vector<4x512xf32>
    %632 = arith.andi %30, %34 : vector<1x512xi1>
    %cst_111 = arith.constant 0.000000e+00 : f32
    %633 = vector.shape_cast %632 : vector<1x512xi1> to vector<1x512xi1>
    %634 = vector.broadcast %633 : vector<1x512xi1> to vector<4x512xi1>
    %635 = vector.broadcast %cst_111 : f32 to vector<4x512xf32>
    %636 = arith.select %634, %631, %635 : vector<4x512xi1>, vector<4x512xf32>
    %c0_112 = arith.constant 0 : index
    %c0_113 = arith.constant 0 : index
    %637 = vector.load %arg8[%c0_112, %c0_113] : memref<4x512xf32, #tpu.memory_space<vmem>>, vector<4x512xf32>
    tpu.vector_store %arg8[%c0_112, %c0_113], %636 {strides = array<i32>} : memref<4x512xf32, #tpu.memory_space<vmem>>, vector<4x512xf32>,
    %c0_114 = arith.constant 0 : index
    %c0_115 = arith.constant 0 : index
    %638 = vector.load %arg8[%c0_114, %c0_115] : memref<4x512xf32, #tpu.memory_space<vmem>>, vector<1x512xf32>
    %c8 = arith.constant 8 : index
    %639 = memref.load %arg5[%c8] : memref<144xf32, #tpu.memory_space<smem>>
    %640 = vector.broadcast %639 : f32 to vector<1x512xf32>
    %641 = arith.mulf %640, %638 : vector<1x512xf32>
    %642 = arith.addf %618, %641 : vector<1x512xf32>
    %c44 = arith.constant 44 : index
    %643 = memref.load %arg5[%c44] : memref<144xf32, #tpu.memory_space<smem>>
    %644 = vector.broadcast %643 : f32 to vector<1x512xf32>
    %645 = arith.mulf %644, %638 : vector<1x512xf32>
    %646 = arith.addf %622, %645 : vector<1x512xf32>
    %c80 = arith.constant 80 : index
    %647 = memref.load %arg5[%c80] : memref<144xf32, #tpu.memory_space<smem>>
    %648 = vector.broadcast %647 : f32 to vector<1x512xf32>
    %649 = arith.mulf %648, %638 : vector<1x512xf32>
    %650 = arith.addf %626, %649 : vector<1x512xf32>
    %c116 = arith.constant 116 : index
    %651 = memref.load %arg5[%c116] : memref<144xf32, #tpu.memory_space<smem>>
    %652 = vector.broadcast %651 : f32 to vector<1x512xf32>
    %653 = arith.mulf %652, %638 : vector<1x512xf32>
    %654 = arith.addf %630, %653 : vector<1x512xf32>
    %c1_116 = arith.constant 1 : index
    %c0_117 = arith.constant 0 : index
    %655 = vector.load %arg8[%c1_116, %c0_117] : memref<4x512xf32, #tpu.memory_space<vmem>>, vector<1x512xf32>
    %c17 = arith.constant 17 : index
    %656 = memref.load %arg5[%c17] : memref<144xf32, #tpu.memory_space<smem>>
    %657 = vector.broadcast %656 : f32 to vector<1x512xf32>
    %658 = arith.mulf %657, %655 : vector<1x512xf32>
    %659 = arith.addf %642, %658 : vector<1x512xf32>
    %c53 = arith.constant 53 : index
    %660 = memref.load %arg5[%c53] : memref<144xf32, #tpu.memory_space<smem>>
    %661 = vector.broadcast %660 : f32 to vector<1x512xf32>
    %662 = arith.mulf %661, %655 : vector<1x512xf32>
    %663 = arith.addf %646, %662 : vector<1x512xf32>
    %c89 = arith.constant 89 : index
    %664 = memref.load %arg5[%c89] : memref<144xf32, #tpu.memory_space<smem>>
    %665 = vector.broadcast %664 : f32 to vector<1x512xf32>
    %666 = arith.mulf %665, %655 : vector<1x512xf32>
    %667 = arith.addf %650, %666 : vector<1x512xf32>
    %c125 = arith.constant 125 : index
    %668 = memref.load %arg5[%c125] : memref<144xf32, #tpu.memory_space<smem>>
    %669 = vector.broadcast %668 : f32 to vector<1x512xf32>
    %670 = arith.mulf %669, %655 : vector<1x512xf32>
    %671 = arith.addf %654, %670 : vector<1x512xf32>
    %c2_118 = arith.constant 2 : index
    %c0_119 = arith.constant 0 : index
    %672 = vector.load %arg8[%c2_118, %c0_119] : memref<4x512xf32, #tpu.memory_space<vmem>>, vector<1x512xf32>
    %c26 = arith.constant 26 : index
    %673 = memref.load %arg5[%c26] : memref<144xf32, #tpu.memory_space<smem>>
    %674 = vector.broadcast %673 : f32 to vector<1x512xf32>
    %675 = arith.mulf %674, %672 : vector<1x512xf32>
    %676 = arith.addf %659, %675 : vector<1x512xf32>
    %c62 = arith.constant 62 : index
    %677 = memref.load %arg5[%c62] : memref<144xf32, #tpu.memory_space<smem>>
    %678 = vector.broadcast %677 : f32 to vector<1x512xf32>
    %679 = arith.mulf %678, %672 : vector<1x512xf32>
    %680 = arith.addf %663, %679 : vector<1x512xf32>
    %c98 = arith.constant 98 : index
    %681 = memref.load %arg5[%c98] : memref<144xf32, #tpu.memory_space<smem>>
    %682 = vector.broadcast %681 : f32 to vector<1x512xf32>
    %683 = arith.mulf %682, %672 : vector<1x512xf32>
    %684 = arith.addf %667, %683 : vector<1x512xf32>
    %c134 = arith.constant 134 : index
    %685 = memref.load %arg5[%c134] : memref<144xf32, #tpu.memory_space<smem>>
    %686 = vector.broadcast %685 : f32 to vector<1x512xf32>
    %687 = arith.mulf %686, %672 : vector<1x512xf32>
    %688 = arith.addf %671, %687 : vector<1x512xf32>
    %c3_120 = arith.constant 3 : index
    %c0_121 = arith.constant 0 : index
    %689 = vector.load %arg8[%c3_120, %c0_121] : memref<4x512xf32, #tpu.memory_space<vmem>>, vector<1x512xf32>
    %c35 = arith.constant 35 : index
    %690 = memref.load %arg5[%c35] : memref<144xf32, #tpu.memory_space<smem>>
    %691 = vector.broadcast %690 : f32 to vector<1x512xf32>
    %692 = arith.mulf %691, %689 : vector<1x512xf32>
    %693 = arith.addf %676, %692 : vector<1x512xf32>
    %c71 = arith.constant 71 : index
    %694 = memref.load %arg5[%c71] : memref<144xf32, #tpu.memory_space<smem>>
    %695 = vector.broadcast %694 : f32 to vector<1x512xf32>
    %696 = arith.mulf %695, %689 : vector<1x512xf32>
    %697 = arith.addf %680, %696 : vector<1x512xf32>
    %c107 = arith.constant 107 : index
    %698 = memref.load %arg5[%c107] : memref<144xf32, #tpu.memory_space<smem>>
    %699 = vector.broadcast %698 : f32 to vector<1x512xf32>
    %700 = arith.mulf %699, %689 : vector<1x512xf32>
    %701 = arith.addf %684, %700 : vector<1x512xf32>
    %c143 = arith.constant 143 : index
    %702 = memref.load %arg5[%c143] : memref<144xf32, #tpu.memory_space<smem>>
    %703 = vector.broadcast %702 : f32 to vector<1x512xf32>
    %704 = arith.mulf %703, %689 : vector<1x512xf32>
    %705 = arith.addf %688, %704 : vector<1x512xf32>
    %c0_122 = arith.constant 0 : index
    %c0_123 = arith.constant 0 : index
    %706 = vector.load %arg0[%c0_122, %c0_123] : memref<4x512xf32, #tpu.memory_space<vmem>>, vector<1x512xf32>
    %707 = arith.addf %706, %693 : vector<1x512xf32>
    %c0_124 = arith.constant 0 : index
    %708 = memref.load %arg6[%c0_124] : memref<4xf32, #tpu.memory_space<smem>>
    %709 = vector.broadcast %708 : f32 to vector<1x512xf32>
    %710 = arith.addf %707, %709 : vector<1x512xf32>
    %c0_125 = arith.constant 0 : index
    %c0_126 = arith.constant 0 : index
    %711 = vector.load %arg7[%c0_125, %c0_126] : memref<4x512xf32, #tpu.memory_space<vmem>>, vector<1x512xf32>
    tpu.vector_store %arg7[%c0_125, %c0_126], %710 {strides = array<i32>} : memref<4x512xf32, #tpu.memory_space<vmem>>, vector<1x512xf32>,
    %c1_127 = arith.constant 1 : index
    %c0_128 = arith.constant 0 : index
    %712 = vector.load %arg0[%c1_127, %c0_128] : memref<4x512xf32, #tpu.memory_space<vmem>>, vector<1x512xf32>
    %713 = arith.addf %712, %697 : vector<1x512xf32>
    %c1_129 = arith.constant 1 : index
    %714 = memref.load %arg6[%c1_129] : memref<4xf32, #tpu.memory_space<smem>>
    %715 = vector.broadcast %714 : f32 to vector<1x512xf32>
    %716 = arith.addf %713, %715 : vector<1x512xf32>
    %c1_130 = arith.constant 1 : index
    %c0_131 = arith.constant 0 : index
    %717 = vector.load %arg7[%c1_130, %c0_131] : memref<4x512xf32, #tpu.memory_space<vmem>>, vector<1x512xf32>
    tpu.vector_store %arg7[%c1_130, %c0_131], %716 {strides = array<i32>} : memref<4x512xf32, #tpu.memory_space<vmem>>, vector<1x512xf32>,
    %c2_132 = arith.constant 2 : index
    %c0_133 = arith.constant 0 : index
    %718 = vector.load %arg0[%c2_132, %c0_133] : memref<4x512xf32, #tpu.memory_space<vmem>>, vector<1x512xf32>
    %719 = arith.addf %718, %701 : vector<1x512xf32>
    %c2_134 = arith.constant 2 : index
    %720 = memref.load %arg6[%c2_134] : memref<4xf32, #tpu.memory_space<smem>>
    %721 = vector.broadcast %720 : f32 to vector<1x512xf32>
    %722 = arith.addf %719, %721 : vector<1x512xf32>
    %c2_135 = arith.constant 2 : index
    %c0_136 = arith.constant 0 : index
    %723 = vector.load %arg7[%c2_135, %c0_136] : memref<4x512xf32, #tpu.memory_space<vmem>>, vector<1x512xf32>
    tpu.vector_store %arg7[%c2_135, %c0_136], %722 {strides = array<i32>} : memref<4x512xf32, #tpu.memory_space<vmem>>, vector<1x512xf32>,
    %c3_137 = arith.constant 3 : index
    %c0_138 = arith.constant 0 : index
    %724 = vector.load %arg0[%c3_137, %c0_138] : memref<4x512xf32, #tpu.memory_space<vmem>>, vector<1x512xf32>
    %725 = arith.addf %724, %705 : vector<1x512xf32>
    %c3_139 = arith.constant 3 : index
    %726 = memref.load %arg6[%c3_139] : memref<4xf32, #tpu.memory_space<smem>>
    %727 = vector.broadcast %726 : f32 to vector<1x512xf32>
    %728 = arith.addf %725, %727 : vector<1x512xf32>
    %c3_140 = arith.constant 3 : index
    %c0_141 = arith.constant 0 : index
    %729 = vector.load %arg7[%c3_140, %c0_141] : memref<4x512xf32, #tpu.memory_space<vmem>>, vector<1x512xf32>
    tpu.vector_store %arg7[%c3_140, %c0_141], %728 {strides = array<i32>} : memref<4x512xf32, #tpu.memory_space<vmem>>, vector<1x512xf32>,
    return
  }
}

</mosaic_0001>

<llo_original>
// kernel: tpu_custom_call.1
$region0: #{tpu_custom_call.1}
  #allocation0 [shape = 'u32[]', space=smem, size = 0x4, offset = 0x4, fixed_abs, tag = 'smem constant byte address 0x4 - core index']
  #allocation1 [shape = 'u32[72,128]{1,0:T(1,128)}', space=vmem, size = 0x9000, scoped, tag = 'internal scratch']
  #allocation2 [shape = 'f32[4,512]{1,0:T(4,128)}', space=vmem, size = 0x2000, scoped, tag = 'scratch operand']
  %s0 = inlined_call_operand.hbm [shape: f32[4,512], index: 0, kind: input, shape index: {}]
  %s1 = inlined_call_operand.vmem [shape: f32[4,1], index: 1, kind: input, shape index: {}]
  %s2 = inlined_call_operand.vmem [shape: f32[4,1], index: 2, kind: input, shape index: {}]
  %s3 = inlined_call_operand.vmem [shape: s32[1,512], index: 3, kind: input, shape index: {}]
  %s4 = inlined_call_operand.vmem [shape: s32[1,512], index: 4, kind: input, shape index: {}]
  %s5 = inlined_call_operand.vmem [shape: f32[144], index: 5, kind: input, shape index: {}]
  %s6 = inlined_call_operand.vmem [shape: f32[4], index: 6, kind: input, shape index: {}]
  %s7 = inlined_call_operand.hbm [shape: f32[4,512], index: 7, kind: output, shape index: {}]
  %s8 = sld [smem:[#allocation0]]
  $region50: #{tpu_custom_call.1} parent=0
    _
  %s10 = ssub.s32 1, %s8
  %s11 = scalar_select 0, %s10, %s8
  $region1: #{tpu_custom_call.1} parent=0
    #allocation3 [shape = 'u8[8192]{0}', space=vmem, size = 0x2000, scoped, tag = 'input window, operand 0, single buffered']
    #allocation4 [shape = 's32[1]{0}', space=sflag, size = 0x4, scoped, tag = 'scoped memory for tpu_custom_call.1']
    #allocation5 [shape = 's32[1]{0}', space=sflag, size = 0x4, scoped, tag = 'scoped memory for tpu_custom_call.1']
    #allocation6 [shape = 's32[1]{0}', space=sflag, size = 0x4, scoped, tag = 'scoped memory for tpu_custom_call.1']
    #allocation7 [shape = 'u8[1024]{0}', space=smem, size = 0x400, scoped, tag = 'input window, operand 5, single buffered']
    #allocation8 [shape = 'u8[512]{0}', space=smem, size = 0x200, scoped, tag = 'input window, operand 6, single buffered']
    #allocation9 [shape = 's32[1]{0}', space=sflag, size = 0x4, scoped, tag = 'scoped memory for tpu_custom_call.1']
    #allocation10 [shape = 'u8[8192]{0}', space=vmem, size = 0x2000, scoped, tag = 'output window, operand 0, single buffered']
    %12 = vsyncpa [#allocation4], 0
    %13 = vsyncpa [#allocation6], 0
    %14 = vsyncpa [#allocation9], 0
    %15 = vsyncpa [#allocation5], 0
    // Predicated region
    $region2: #{tpu_custom_call.1} parent=1 // pred_check
      _
    $region3: #{tpu_custom_call.1} parent=1 // pred_check_branch
      %17 = sbr.rel (0) target = $region5
    $region4: #{tpu_custom_call.1} parent=1 // pred_region
      %19 = vsyncadd [#allocation4], 0
      %s21 = sshll.u32 %s0, 4
      %s22 = int_to_ptr.hbm [resolvable:$true] %s21
      %s23 = sshll.u32 [#allocation3], 4
      %s24 = int_to_ptr.vmem [resolvable:$true] %s23
      %26 = dma.hbm_to_vmem [thread:$0]  %s22, 256, %s24, [#allocation4]
    $region5: #{tpu_custom_call.1} parent=1 // pred_fallthru
      _
    // Predicated region
    $region6: #{tpu_custom_call.1} parent=1 // pred_check
      _
    $region7: #{tpu_custom_call.1} parent=1 // pred_check_branch
      %28 = sbr.rel (0) target = $region9
    $region8: #{tpu_custom_call.1} parent=1 // pred_region
      _
    $region9: #{tpu_custom_call.1} parent=1 // pred_fallthru
      _
    // Predicated region
    $region10: #{tpu_custom_call.1} parent=1 // pred_check
      _
    $region11: #{tpu_custom_call.1} parent=1 // pred_check_branch
      %30 = sbr.rel (0) target = $region13
    $region12: #{tpu_custom_call.1} parent=1 // pred_region
      _
    $region13: #{tpu_custom_call.1} parent=1 // pred_fallthru
      _
    // Predicated region
    $region14: #{tpu_custom_call.1} parent=1 // pred_check
      _
    $region15: #{tpu_custom_call.1} parent=1 // pred_check_branch
      %32 = sbr.rel (0) target = $region17
    $region16: #{tpu_custom_call.1} parent=1 // pred_region
      _
    $region17: #{tpu_custom_call.1} parent=1 // pred_fallthru
      _
    // Predicated region
    $region18: #{tpu_custom_call.1} parent=1 // pred_check
      _
    $region19: #{tpu_custom_call.1} parent=1 // pred_check_branch
      %34 = sbr.rel (0) target = $region21
    $region20: #{tpu_custom_call.1} parent=1 // pred_region
      _
    $region21: #{tpu_custom_call.1} parent=1 // pred_fallthru
      _
    // Predicated region
    $region22: #{tpu_custom_call.1} parent=1 // pred_check
      _
    $region23: #{tpu_custom_call.1} parent=1 // pred_check_branch
      %36 = sbr.rel (0) target = $region25
    $region24: #{tpu_custom_call.1} parent=1 // pred_region
      %38 = vsyncadd [#allocation6], 0
      %s40 = sshll.u32 %s5, 4
      %s41 = int_to_ptr.vmem [resolvable:$true] %s40
      %43 = dma.vmem_to_smem %s41, 32, [#allocation7], [#allocation6]
    $region25: #{tpu_custom_call.1} parent=1 // pred_fallthru
      _
    // Predicated region
    $region26: #{tpu_custom_call.1} parent=1 // pred_check
      _
    $region27: #{tpu_custom_call.1} parent=1 // pred_check_branch
      %45 = sbr.rel (0) target = $region29
    $region28: #{tpu_custom_call.1} parent=1 // pred_region
      %47 = vsyncadd [#allocation9], 0
      %s49 = sshll.u32 %s6, 4
      %s50 = int_to_ptr.vmem [resolvable:$true] %s49
      %52 = dma.vmem_to_smem %s50, 16, [#allocation8], [#allocation9]
    $region29: #{tpu_custom_call.1} parent=1 // pred_fallthru
      _
    // Predicated region
    $region30: #{tpu_custom_call.1} parent=1 // pred_check
      _
    $region31: #{tpu_custom_call.1} parent=1 // pred_check_branch
      %54 = sbr.rel (0) target = $region33
    $region32: #{tpu_custom_call.1} parent=1 // pred_region
      %56 = dma.done [#allocation4], 256
    $region33: #{tpu_custom_call.1} parent=1 // pred_fallthru
      _
    // Predicated region
    $region34: #{tpu_custom_call.1} parent=1 // pred_check
      _
    $region35: #{tpu_custom_call.1} parent=1 // pred_check_branch
      %58 = sbr.rel (0) target = $region37
    $region36: #{tpu_custom_call.1} parent=1 // pred_region
      %60 = dma.done [#allocation6], 32
    $region37: #{tpu_custom_call.1} parent=1 // pred_fallthru
      _
    // Predicated region
    $region38: #{tpu_custom_call.1} parent=1 // pred_check
      _
    $region39: #{tpu_custom_call.1} parent=1 // pred_check_branch
      %62 = sbr.rel (0) target = $region41
    $region40: #{tpu_custom_call.1} parent=1 // pred_region
      %64 = dma.done [#allocation9], 16
    $region41: #{tpu_custom_call.1} parent=1 // pred_fallthru
      _
    %65 = sfence
    %v66 = vld [vmem:[#allocation3] sm:$0xff]
    %v67 = vld [vmem:[#allocation3 + $0x8] sm:$0xff]
    %70 = vst [vmem:[#allocation1] ss:$2 sm:$0xff] %v66
    %s71 = scalar_lea.vmem [#allocation1], 16
    %72 = vst [vmem:[%s71] ss:$2 sm:$0xff] %v67
    %v73 = vld.sshfl [vmem:[#allocation1] sm:$0xff pattern:$0x75316420]
    %v74 = vld.sshfl [vmem:[#allocation1 + $0x8] sm:$0xff pattern:$0x75316420]
    %v75 = vld.sshfl [vmem:[#allocation1 + $0x10] sm:$0xff pattern:$0x75316420]
    %v76 = vld.sshfl [vmem:[#allocation1 + $0x18] sm:$0xff pattern:$0x75316420]
    %vm81 = vcmask 1043456
    %v82 = vsel %vm81, %v73, 0.0
    %v83 = vsel %vm81, %v74, 0.0
    %v84 = vadd.f32 %v82, %v83
    %v85 = vsel %vm81, %v75, 0.0
    %v86 = vadd.f32 %v84, %v85
    %v87 = vsel %vm81, %v76, 0.0
    %v88 = vadd.f32 %v86, %v87
    %89 = vadd.xlane.f32.xlu0 %v88
    %v90 = vpop.xlane.xlu0 %89
    %v91 = vmul.f32 %v90, 0.001953125
    %v94 = vunpack.c.l.s4 839922192
    %v95 = vunpack.c.0.s8 %v94
    %v96 = vperm.slane %v91, %v95
    %v98 = vsub.f32 %v66, %v96
    %v99 = vsub.f32 %v67, %v96
    %v100 = vmul.f32 %v98, %v98
    %v101 = vmul.f32 %v99, %v99
    %104 = vst [vmem:[#allocation1] ss:$2 sm:$0xff] %v100
    %s105 = scalar_lea.vmem [#allocation1], 16
    %106 = vst [vmem:[%s105] ss:$2 sm:$0xff] %v101
    %v107 = vld.sshfl [vmem:[#allocation1] sm:$0xff pattern:$0x75316420]
    %v108 = vld.sshfl [vmem:[#allocation1 + $0x8] sm:$0xff pattern:$0x75316420]
    %v109 = vld.sshfl [vmem:[#allocation1 + $0x10] sm:$0xff pattern:$0x75316420]
    %v110 = vld.sshfl [vmem:[#allocation1 + $0x18] sm:$0xff pattern:$0x75316420]
    %v115 = vsel %vm81, %v107, 0.0
    %v116 = vsel %vm81, %v108, 0.0
    %v117 = vadd.f32 %v115, %v116
    %v118 = vsel %vm81, %v109, 0.0
    %v119 = vadd.f32 %v117, %v118
    %v120 = vsel %vm81, %v110, 0.0
    %v121 = vadd.f32 %v119, %v120
    %122 = vadd.xlane.f32.xlu0 %v121
    %v123 = vpop.xlane.xlu0 %122
    %v124 = vmul.f32 %v123, 0.001953125
    %v125 = vadd.f32 %v124, 1e-05
    %v126 = vrsqrt.pop %v125
    %v127 = vmul.f32 %v126, %v125
    %v128 = vmul.f32 %v127, %v126
    %v129 = vmul.f32 0.5, %v128
    %v130 = vsub.f32 1.5, %v129
    %v131 = vmul.f32 %v126, %v130
    %vm132 = vweird.f32 %v125
    %vm133 = vweird.f32 %v126
    %vm134 = vmor %vm132, %vm133
    %v135 = vsel %vm134, %v126, %v131
    %v136 = vld [vmem:[%s1] sm:$0xf]
    %v137 = vmul.f32 %v136, %v135
    %v138 = vmul.f32 %v137, 0.33333334
    %v139 = vld [vmem:[%s2] sm:$0xf]
    %v140 = vmul.f32 %v139, 0.33333334
    %142 = vset.pattern.permute.xlu0 0
    %143 = vperm.xlu0 %142, %v138
    %v144 = vpop.permute.xlu0 %143
    %v146 = vunpack.c.l.s4 839922192
    %v147 = vunpack.c.0.s8 %v146
    %v148 = vperm.slane %v144, %v147
    %v150 = vmul.f32 %v98, %v148
    %v151 = vmul.f32 %v99, %v148
    %153 = vset.pattern.permute.xlu0 0
    %154 = vperm.xlu0 %153, %v140
    %v155 = vpop.permute.xlu0 %154
    %v157 = vunpack.c.l.s4 839922192
    %v158 = vunpack.c.0.s8 %v157
    %v159 = vperm.slane %v155, %v158
    %v161 = vadd.f32 %v150, %v159
    %v162 = vadd.f32 %v151, %v159
    %v163 = vtanh.pop %v161
    %v164 = vtanh.pop %v162
    %v165 = vld [vmem:[%s3] sm:$0xf]
    %v166 = vld [vmem:[%s4] sm:$0xf]
    %vm167 = vcmp.lt.s32.totalorder %v165, 15
    %vm168 = vcmp.ge.s32.totalorder %v165, 1
    %vm169 = vcmp.lt.s32.totalorder %v166, 15
    %vm170 = vcmp.ge.s32.totalorder %v166, 1
    %173 = vst [vmem:[#allocation1] ss:$2 sm:$0xff] %v163
    %s174 = scalar_lea.vmem [#allocation1], 16
    %175 = vst [vmem:[%s174] ss:$2 sm:$0xff] %v164
    %v176 = vld.sshfl [vmem:[#allocation1] sm:$0xff pattern:$0x75316420]
    %v177 = vld.sshfl [vmem:[#allocation1 + $0x8] sm:$0xff pattern:$0x75316420]
    %v178 = vld.sshfl [vmem:[#allocation1 + $0x10] sm:$0xff pattern:$0x75316420]
    %v179 = vld.sshfl [vmem:[#allocation1 + $0x18] sm:$0xff pattern:$0x75316420]
    %184 = vrot.lane.b32.xlu0 %v176, 17
    %v185 = vpop.permute.xlu0 %184
    %186 = vrot.lane.b32.xlu0 %v177, 17
    %v187 = vpop.permute.xlu0 %186
    %188 = vrot.lane.b32.xlu0 %v178, 17
    %v189 = vpop.permute.xlu0 %188
    %190 = vrot.lane.b32.xlu0 %v179, 17
    %v191 = vpop.permute.xlu0 %190
    %v192 = vlaneseq
    %v193 = vand.u32 %v192, 127
    %vm194 = vcmp.lt.s32.totalorder %v193, 17
    %v195 = vsel %vm194, %v189, %v191
    %v196 = vsel %vm194, %v187, %v189
    %v197 = vsel %vm194, %v185, %v187
    %v198 = vsel %vm194, %v191, %v185
    %vm199 = vmand %vm168, %vm170
    %v200 = vsel %vm199, 1, 0
    %v201 = vperm.slane %v200, 0
    %v202 = vperm.slane %v200, 1
    %v203 = vperm.slane %v200, 2
    %v204 = vperm.slane %v200, 3
    %vm205 = vcmp.eq.s32.totalorder %v201, 1
    %vm206 = vcmp.eq.s32.totalorder %v202, 1
    %vm207 = vcmp.eq.s32.totalorder %v203, 1
    %vm208 = vcmp.eq.s32.totalorder %v204, 1
    %v209 = vsel %vm205, %v198, 0.0
    %v210 = vsel %vm206, %v197, 0.0
    %v211 = vsel %vm207, %v196, 0.0
    %v212 = vsel %vm208, %v195, 0.0
    %v217 = vrot.slane %v210, 4
    %v218 = vrot.slane %v212, 4
    %v219 = vsel %vm81, %v209, %v217
    %v220 = vsel %vm81, %v211, %v218
    %223 = vst [vmem:[#allocation2] sm:$0xff] %v219
    %224 = vst [vmem:[#allocation2 + $0x8] sm:$0xff] %v220
    %v225 = vld [vmem:[#allocation2] ss:$4 sm:$0xf]
    %s226 = sld [smem:[#allocation7]]
    %v227 = vstv %s226
    %v228 = vmul.f32 %v227, %v225
    %v229 = vadd.f32 %v228, 0.0
    %s230 = sld [smem:[#allocation7 + $0x24]]
    %v231 = vstv %s230
    %v232 = vmul.f32 %v231, %v225
    %v233 = vadd.f32 %v232, 0.0
    %s234 = sld [smem:[#allocation7 + $0x48]]
    %v235 = vstv %s234
    %v236 = vmul.f32 %v235, %v225
    %v237 = vadd.f32 %v236, 0.0
    %s238 = sld [smem:[#allocation7 + $0x6c]]
    %v239 = vstv %s238
    %v240 = vmul.f32 %v239, %v225
    %v241 = vadd.f32 %v240, 0.0
    %s242 = scalar_lea.vmem [#allocation2], 1
    %v243 = vld [vmem:[%s242] ss:$4 sm:$0xf]
    %s244 = sld [smem:[#allocation7 + $0x9]]
    %v245 = vstv %s244
    %v246 = vmul.f32 %v245, %v243
    %v247 = vadd.f32 %v229, %v246
    %s248 = sld [smem:[#allocation7 + $0x2d]]
    %v249 = vstv %s248
    %v250 = vmul.f32 %v249, %v243
    %v251 = vadd.f32 %v233, %v250
    %s252 = sld [smem:[#allocation7 + $0x51]]
    %v253 = vstv %s252
    %v254 = vmul.f32 %v253, %v243
    %v255 = vadd.f32 %v237, %v254
    %s256 = sld [smem:[#allocation7 + $0x75]]
    %v257 = vstv %s256
    %v258 = vmul.f32 %v257, %v243
    %v259 = vadd.f32 %v241, %v258
    %s260 = scalar_lea.vmem [#allocation2], 2
    %v261 = vld [vmem:[%s260] ss:$4 sm:$0xf]
    %s262 = sld [smem:[#allocation7 + $0x12]]
    %v263 = vstv %s262
    %v264 = vmul.f32 %v263, %v261
    %v265 = vadd.f32 %v247, %v264
    %s266 = sld [smem:[#allocation7 + $0x36]]
    %v267 = vstv %s266
    %v268 = vmul.f32 %v267, %v261
    %v269 = vadd.f32 %v251, %v268
    %s270 = sld [smem:[#allocation7 + $0x5a]]
    %v271 = vstv %s270
    %v272 = vmul.f32 %v271, %v261
    %v273 = vadd.f32 %v255, %v272
    %s274 = sld [smem:[#allocation7 + $0x7e]]
    %v275 = vstv %s274
    %v276 = vmul.f32 %v275, %v261
    %v277 = vadd.f32 %v259, %v276
    %s278 = scalar_lea.vmem [#allocation2], 3
    %v279 = vld [vmem:[%s278] ss:$4 sm:$0xf]
    %s280 = sld [smem:[#allocation7 + $0x1b]]
    %v281 = vstv %s280
    %v282 = vmul.f32 %v281, %v279
    %v283 = vadd.f32 %v265, %v282
    %s284 = sld [smem:[#allocation7 + $0x3f]]
    %v285 = vstv %s284
    %v286 = vmul.f32 %v285, %v279
    %v287 = vadd.f32 %v269, %v286
    %s288 = sld [smem:[#allocation7 + $0x63]]
    %v289 = vstv %s288
    %v290 = vmul.f32 %v289, %v279
    %v291 = vadd.f32 %v273, %v290
    %s292 = sld [smem:[#allocation7 + $0x87]]
    %v293 = vstv %s292
    %v294 = vmul.f32 %v293, %v279
    %v295 = vadd.f32 %v277, %v294
    %296 = vst [vmem:[#allocation1] ss:$2 sm:$0xff] %v163
    %s297 = scalar_lea.vmem [#allocation1], 16
    %298 = vst [vmem:[%s297] ss:$2 sm:$0xff] %v164
    %v299 = vld.sshfl [vmem:[#allocation1] sm:$0xff pattern:$0x75316420]
    %v300 = vld.sshfl [vmem:[#allocation1 + $0x8] sm:$0xff pattern:$0x75316420]
    %v301 = vld.sshfl [vmem:[#allocation1 + $0x10] sm:$0xff pattern:$0x75316420]
    %v302 = vld.sshfl [vmem:[#allocation1 + $0x18] sm:$0xff pattern:$0x75316420]
    %307 = vrot.lane.b32.xlu0 %v299, 16
    %v308 = vpop.permute.xlu0 %307
    %309 = vrot.lane.b32.xlu0 %v300, 16
    %v310 = vpop.permute.xlu0 %309
    %311 = vrot.lane.b32.xlu0 %v301, 16
    %v312 = vpop.permute.xlu0 %311
    %313 = vrot.lane.b32.xlu0 %v302, 16
    %v314 = vpop.permute.xlu0 %313
    %vm315 = vcmp.lt.s32.totalorder %v193, 16
    %v316 = vsel %vm315, %v312, %v314
    %v317 = vsel %vm315, %v310, %v312
    %v318 = vsel %vm315, %v308, %v310
    %v319 = vsel %vm315, %v314, %v308
    %v320 = vsel %vm168, 1, 0
    %v321 = vperm.slane %v320, 0
    %v322 = vperm.slane %v320, 1
    %v323 = vperm.slane %v320, 2
    %v324 = vperm.slane %v320, 3
    %vm325 = vcmp.eq.s32.totalorder %v321, 1
    %vm326 = vcmp.eq.s32.totalorder %v322, 1
    %vm327 = vcmp.eq.s32.totalorder %v323, 1
    %vm328 = vcmp.eq.s32.totalorder %v324, 1
    %v329 = vsel %vm325, %v319, 0.0
    %v330 = vsel %vm326, %v318, 0.0
    %v331 = vsel %vm327, %v317, 0.0
    %v332 = vsel %vm328, %v316, 0.0
    %v337 = vrot.slane %v330, 4
    %v338 = vrot.slane %v332, 4
    %v339 = vsel %vm81, %v329, %v337
    %v340 = vsel %vm81, %v331, %v338
    %343 = vst [vmem:[#allocation2] sm:$0xff] %v339
    %344 = vst [vmem:[#allocation2 + $0x8] sm:$0xff] %v340
    %v345 = vld [vmem:[#allocation2] ss:$4 sm:$0xf]
    %s346 = sld [smem:[#allocation7 + $0x1]]
    %v347 = vstv %s346
    %v348 = vmul.f32 %v347, %v345
    %v349 = vadd.f32 %v283, %v348
    %s350 = sld [smem:[#allocation7 + $0x25]]
    %v351 = vstv %s350
    %v352 = vmul.f32 %v351, %v345
    %v353 = vadd.f32 %v287, %v352
    %s354 = sld [smem:[#allocation7 + $0x49]]
    %v355 = vstv %s354
    %v356 = vmul.f32 %v355, %v345
    %v357 = vadd.f32 %v291, %v356
    %s358 = sld [smem:[#allocation7 + $0x6d]]
    %v359 = vstv %s358
    %v360 = vmul.f32 %v359, %v345
    %v361 = vadd.f32 %v295, %v360
    %v362 = vld [vmem:[%s242] ss:$4 sm:$0xf]
    %s363 = sld [smem:[#allocation7 + $0xa]]
    %v364 = vstv %s363
    %v365 = vmul.f32 %v364, %v362
    %v366 = vadd.f32 %v349, %v365
    %s367 = sld [smem:[#allocation7 + $0x2e]]
    %v368 = vstv %s367
    %v369 = vmul.f32 %v368, %v362
    %v370 = vadd.f32 %v353, %v369
    %s371 = sld [smem:[#allocation7 + $0x52]]
    %v372 = vstv %s371
    %v373 = vmul.f32 %v372, %v362
    %v374 = vadd.f32 %v357, %v373
    %s375 = sld [smem:[#allocation7 + $0x76]]
    %v376 = vstv %s375
    %v377 = vmul.f32 %v376, %v362
    %v378 = vadd.f32 %v361, %v377
    %v379 = vld [vmem:[%s260] ss:$4 sm:$0xf]
    %s380 = sld [smem:[#allocation7 + $0x13]]
    %v381 = vstv %s380
    %v382 = vmul.f32 %v381, %v379
    %v383 = vadd.f32 %v366, %v382
    %s384 = sld [smem:[#allocation7 + $0x37]]
    %v385 = vstv %s384
    %v386 = vmul.f32 %v385, %v379
    %v387 = vadd.f32 %v370, %v386
    %s388 = sld [smem:[#allocation7 + $0x5b]]
    %v389 = vstv %s388
    %v390 = vmul.f32 %v389, %v379
    %v391 = vadd.f32 %v374, %v390
    %s392 = sld [smem:[#allocation7 + $0x7f]]
    %v393 = vstv %s392
    %v394 = vmul.f32 %v393, %v379
    %v395 = vadd.f32 %v378, %v394
    %v396 = vld [vmem:[%s278] ss:$4 sm:$0xf]
    %s397 = sld [smem:[#allocation7 + $0x1c]]
    %v398 = vstv %s397
    %v399 = vmul.f32 %v398, %v396
    %v400 = vadd.f32 %v383, %v399
    %s401 = sld [smem:[#allocation7 + $0x40]]
    %v402 = vstv %s401
    %v403 = vmul.f32 %v402, %v396
    %v404 = vadd.f32 %v387, %v403
    %s405 = sld [smem:[#allocation7 + $0x64]]
    %v406 = vstv %s405
    %v407 = vmul.f32 %v406, %v396
    %v408 = vadd.f32 %v391, %v407
    %s409 = sld [smem:[#allocation7 + $0x88]]
    %v410 = vstv %s409
    %v411 = vmul.f32 %v410, %v396
    %v412 = vadd.f32 %v395, %v411
    %413 = vst [vmem:[#allocation1] ss:$2 sm:$0xff] %v163
    %s414 = scalar_lea.vmem [#allocation1], 16
    %415 = vst [vmem:[%s414] ss:$2 sm:$0xff] %v164
    %v416 = vld.sshfl [vmem:[#allocation1] sm:$0xff pattern:$0x75316420]
    %v417 = vld.sshfl [vmem:[#allocation1 + $0x8] sm:$0xff pattern:$0x75316420]
    %v418 = vld.sshfl [vmem:[#allocation1 + $0x10] sm:$0xff pattern:$0x75316420]
    %v419 = vld.sshfl [vmem:[#allocation1 + $0x18] sm:$0xff pattern:$0x75316420]
    %424 = vrot.lane.b32.xlu0 %v416, 15
    %v425 = vpop.permute.xlu0 %424
    %426 = vrot.lane.b32.xlu0 %v417, 15
    %v427 = vpop.permute.xlu0 %426
    %428 = vrot.lane.b32.xlu0 %v418, 15
    %v429 = vpop.permute.xlu0 %428
    %430 = vrot.lane.b32.xlu0 %v419, 15
    %v431 = vpop.permute.xlu0 %430
    %vm432 = vcmp.lt.s32.totalorder %v193, 15
    %v433 = vsel %vm432, %v429, %v431
    %v434 = vsel %vm432, %v427, %v429
    %v435 = vsel %vm432, %v425, %v427
    %v436 = vsel %vm432, %v431, %v425
    %vm437 = vmand %vm168, %vm169
    %v438 = vsel %vm437, 1, 0
    %v439 = vperm.slane %v438, 0
    %v440 = vperm.slane %v438, 1
    %v441 = vperm.slane %v438, 2
    %v442 = vperm.slane %v438, 3
    %vm443 = vcmp.eq.s32.totalorder %v439, 1
    %vm444 = vcmp.eq.s32.totalorder %v440, 1
    %vm445 = vcmp.eq.s32.totalorder %v441, 1
    %vm446 = vcmp.eq.s32.totalorder %v442, 1
    %v447 = vsel %vm443, %v436, 0.0
    %v448 = vsel %vm444, %v435, 0.0
    %v449 = vsel %vm445, %v434, 0.0
    %v450 = vsel %vm446, %v433, 0.0
    %v455 = vrot.slane %v448, 4
    %v456 = vrot.slane %v450, 4
    %v457 = vsel %vm81, %v447, %v455
    %v458 = vsel %vm81, %v449, %v456
    %461 = vst [vmem:[#allocation2] sm:$0xff] %v457
    %462 = vst [vmem:[#allocation2 + $0x8] sm:$0xff] %v458
    %v463 = vld [vmem:[#allocation2] ss:$4 sm:$0xf]
    %s464 = sld [smem:[#allocation7 + $0x2]]
    %v465 = vstv %s464
    %v466 = vmul.f32 %v465, %v463
    %v467 = vadd.f32 %v400, %v466
    %s468 = sld [smem:[#allocation7 + $0x26]]
    %v469 = vstv %s468
    %v470 = vmul.f32 %v469, %v463
    %v471 = vadd.f32 %v404, %v470
    %s472 = sld [smem:[#allocation7 + $0x4a]]
    %v473 = vstv %s472
    %v474 = vmul.f32 %v473, %v463
    %v475 = vadd.f32 %v408, %v474
    %s476 = sld [smem:[#allocation7 + $0x6e]]
    %v477 = vstv %s476
    %v478 = vmul.f32 %v477, %v463
    %v479 = vadd.f32 %v412, %v478
    %v480 = vld [vmem:[%s242] ss:$4 sm:$0xf]
    %s481 = sld [smem:[#allocation7 + $0xb]]
    %v482 = vstv %s481
    %v483 = vmul.f32 %v482, %v480
    %v484 = vadd.f32 %v467, %v483
    %s485 = sld [smem:[#allocation7 + $0x2f]]
    %v486 = vstv %s485
    %v487 = vmul.f32 %v486, %v480
    %v488 = vadd.f32 %v471, %v487
    %s489 = sld [smem:[#allocation7 + $0x53]]
    %v490 = vstv %s489
    %v491 = vmul.f32 %v490, %v480
    %v492 = vadd.f32 %v475, %v491
    %s493 = sld [smem:[#allocation7 + $0x77]]
    %v494 = vstv %s493
    %v495 = vmul.f32 %v494, %v480
    %v496 = vadd.f32 %v479, %v495
    %v497 = vld [vmem:[%s260] ss:$4 sm:$0xf]
    %s498 = sld [smem:[#allocation7 + $0x14]]
    %v499 = vstv %s498
    %v500 = vmul.f32 %v499, %v497
    %v501 = vadd.f32 %v484, %v500
    %s502 = sld [smem:[#allocation7 + $0x38]]
    %v503 = vstv %s502
    %v504 = vmul.f32 %v503, %v497
    %v505 = vadd.f32 %v488, %v504
    %s506 = sld [smem:[#allocation7 + $0x5c]]
    %v507 = vstv %s506
    %v508 = vmul.f32 %v507, %v497
    %v509 = vadd.f32 %v492, %v508
    %s510 = sld [smem:[#allocation7 + $0x80]]
    %v511 = vstv %s510
    %v512 = vmul.f32 %v511, %v497
    %v513 = vadd.f32 %v496, %v512
    %v514 = vld [vmem:[%s278] ss:$4 sm:$0xf]
    %s515 = sld [smem:[#allocation7 + $0x1d]]
    %v516 = vstv %s515
    %v517 = vmul.f32 %v516, %v514
    %v518 = vadd.f32 %v501, %v517
    %s519 = sld [smem:[#allocation7 + $0x41]]
    %v520 = vstv %s519
    %v521 = vmul.f32 %v520, %v514
    %v522 = vadd.f32 %v505, %v521
    %s523 = sld [smem:[#allocation7 + $0x65]]
    %v524 = vstv %s523
    %v525 = vmul.f32 %v524, %v514
    %v526 = vadd.f32 %v509, %v525
    %s527 = sld [smem:[#allocation7 + $0x89]]
    %v528 = vstv %s527
    %v529 = vmul.f32 %v528, %v514
    %v530 = vadd.f32 %v513, %v529
    %531 = vst [vmem:[#allocation1] ss:$2 sm:$0xff] %v163
    %s532 = scalar_lea.vmem [#allocation1], 16
    %533 = vst [vmem:[%s532] ss:$2 sm:$0xff] %v164
    %v534 = vld.sshfl [vmem:[#allocation1] sm:$0xff pattern:$0x75316420]
    %v535 = vld.sshfl [vmem:[#allocation1 + $0x8] sm:$0xff pattern:$0x75316420]
    %v536 = vld.sshfl [vmem:[#allocation1 + $0x10] sm:$0xff pattern:$0x75316420]
    %v537 = vld.sshfl [vmem:[#allocation1 + $0x18] sm:$0xff pattern:$0x75316420]
    %542 = vrot.lane.b32.xlu0 %v534, 1
    %v543 = vpop.permute.xlu0 %542
    %544 = vrot.lane.b32.xlu0 %v535, 1
    %v545 = vpop.permute.xlu0 %544
    %546 = vrot.lane.b32.xlu0 %v536, 1
    %v547 = vpop.permute.xlu0 %546
    %548 = vrot.lane.b32.xlu0 %v537, 1
    %v549 = vpop.permute.xlu0 %548
    %vm550 = vcmp.lt.s32.totalorder %v193, 1
    %v551 = vsel %vm550, %v547, %v549
    %v552 = vsel %vm550, %v545, %v547
    %v553 = vsel %vm550, %v543, %v545
    %v554 = vsel %vm550, %v549, %v543
    %v555 = vsel %vm170, 1, 0
    %v556 = vperm.slane %v555, 0
    %v557 = vperm.slane %v555, 1
    %v558 = vperm.slane %v555, 2
    %v559 = vperm.slane %v555, 3
    %vm560 = vcmp.eq.s32.totalorder %v556, 1
    %vm561 = vcmp.eq.s32.totalorder %v557, 1
    %vm562 = vcmp.eq.s32.totalorder %v558, 1
    %vm563 = vcmp.eq.s32.totalorder %v559, 1
    %v564 = vsel %vm560, %v554, 0.0
    %v565 = vsel %vm561, %v553, 0.0
    %v566 = vsel %vm562, %v552, 0.0
    %v567 = vsel %vm563, %v551, 0.0
    %v572 = vrot.slane %v565, 4
    %v573 = vrot.slane %v567, 4
    %v574 = vsel %vm81, %v564, %v572
    %v575 = vsel %vm81, %v566, %v573
    %578 = vst [vmem:[#allocation2] sm:$0xff] %v574
    %579 = vst [vmem:[#allocation2 + $0x8] sm:$0xff] %v575
    %v580 = vld [vmem:[#allocation2] ss:$4 sm:$0xf]
    %s581 = sld [smem:[#allocation7 + $0x3]]
    %v582 = vstv %s581
    %v583 = vmul.f32 %v582, %v580
    %v584 = vadd.f32 %v518, %v583
    %s585 = sld [smem:[#allocation7 + $0x27]]
    %v586 = vstv %s585
    %v587 = vmul.f32 %v586, %v580
    %v588 = vadd.f32 %v522, %v587
    %s589 = sld [smem:[#allocation7 + $0x4b]]
    %v590 = vstv %s589
    %v591 = vmul.f32 %v590, %v580
    %v592 = vadd.f32 %v526, %v591
    %s593 = sld [smem:[#allocation7 + $0x6f]]
    %v594 = vstv %s593
    %v595 = vmul.f32 %v594, %v580
    %v596 = vadd.f32 %v530, %v595
    %v597 = vld [vmem:[%s242] ss:$4 sm:$0xf]
    %s598 = sld [smem:[#allocation7 + $0xc]]
    %v599 = vstv %s598
    %v600 = vmul.f32 %v599, %v597
    %v601 = vadd.f32 %v584, %v600
    %s602 = sld [smem:[#allocation7 + $0x30]]
    %v603 = vstv %s602
    %v604 = vmul.f32 %v603, %v597
    %v605 = vadd.f32 %v588, %v604
    %s606 = sld [smem:[#allocation7 + $0x54]]
    %v607 = vstv %s606
    %v608 = vmul.f32 %v607, %v597
    %v609 = vadd.f32 %v592, %v608
    %s610 = sld [smem:[#allocation7 + $0x78]]
    %v611 = vstv %s610
    %v612 = vmul.f32 %v611, %v597
    %v613 = vadd.f32 %v596, %v612
    %v614 = vld [vmem:[%s260] ss:$4 sm:$0xf]
    %s615 = sld [smem:[#allocation7 + $0x15]]
    %v616 = vstv %s615
    %v617 = vmul.f32 %v616, %v614
    %v618 = vadd.f32 %v601, %v617
    %s619 = sld [smem:[#allocation7 + $0x39]]
    %v620 = vstv %s619
    %v621 = vmul.f32 %v620, %v614
    %v622 = vadd.f32 %v605, %v621
    %s623 = sld [smem:[#allocation7 + $0x5d]]
    %v624 = vstv %s623
    %v625 = vmul.f32 %v624, %v614
    %v626 = vadd.f32 %v609, %v625
    %s627 = sld [smem:[#allocation7 + $0x81]]
    %v628 = vstv %s627
    %v629 = vmul.f32 %v628, %v614
    %v630 = vadd.f32 %v613, %v629
    %v631 = vld [vmem:[%s278] ss:$4 sm:$0xf]
    %s632 = sld [smem:[#allocation7 + $0x1e]]
    %v633 = vstv %s632
    %v634 = vmul.f32 %v633, %v631
    %v635 = vadd.f32 %v618, %v634
    %s636 = sld [smem:[#allocation7 + $0x42]]
    %v637 = vstv %s636
    %v638 = vmul.f32 %v637, %v631
    %v639 = vadd.f32 %v622, %v638
    %s640 = sld [smem:[#allocation7 + $0x66]]
    %v641 = vstv %s640
    %v642 = vmul.f32 %v641, %v631
    %v643 = vadd.f32 %v626, %v642
    %s644 = sld [smem:[#allocation7 + $0x8a]]
    %v645 = vstv %s644
    %v646 = vmul.f32 %v645, %v631
    %v647 = vadd.f32 %v630, %v646
    %648 = vst [vmem:[#allocation2] sm:$0xff] %v163
    %649 = vst [vmem:[#allocation2 + $0x8] sm:$0xff] %v164
    %v650 = vld [vmem:[#allocation2] ss:$4 sm:$0xf]
    %s651 = sld [smem:[#allocation7 + $0x4]]
    %v652 = vstv %s651
    %v653 = vmul.f32 %v652, %v650
    %v654 = vadd.f32 %v635, %v653
    %s655 = sld [smem:[#allocation7 + $0x28]]
    %v656 = vstv %s655
    %v657 = vmul.f32 %v656, %v650
    %v658 = vadd.f32 %v639, %v657
    %s659 = sld [smem:[#allocation7 + $0x4c]]
    %v660 = vstv %s659
    %v661 = vmul.f32 %v660, %v650
    %v662 = vadd.f32 %v643, %v661
    %s663 = sld [smem:[#allocation7 + $0x70]]
    %v664 = vstv %s663
    %v665 = vmul.f32 %v664, %v650
    %v666 = vadd.f32 %v647, %v665
    %v667 = vld [vmem:[%s242] ss:$4 sm:$0xf]
    %s668 = sld [smem:[#allocation7 + $0xd]]
    %v669 = vstv %s668
    %v670 = vmul.f32 %v669, %v667
    %v671 = vadd.f32 %v654, %v670
    %s672 = sld [smem:[#allocation7 + $0x31]]
    %v673 = vstv %s672
    %v674 = vmul.f32 %v673, %v667
    %v675 = vadd.f32 %v658, %v674
    %s676 = sld [smem:[#allocation7 + $0x55]]
    %v677 = vstv %s676
    %v678 = vmul.f32 %v677, %v667
    %v679 = vadd.f32 %v662, %v678
    %s680 = sld [smem:[#allocation7 + $0x79]]
    %v681 = vstv %s680
    %v682 = vmul.f32 %v681, %v667
    %v683 = vadd.f32 %v666, %v682
    %v684 = vld [vmem:[%s260] ss:$4 sm:$0xf]
    %s685 = sld [smem:[#allocation7 + $0x16]]
    %v686 = vstv %s685
    %v687 = vmul.f32 %v686, %v684
    %v688 = vadd.f32 %v671, %v687
    %s689 = sld [smem:[#allocation7 + $0x3a]]
    %v690 = vstv %s689
    %v691 = vmul.f32 %v690, %v684
    %v692 = vadd.f32 %v675, %v691
    %s693 = sld [smem:[#allocation7 + $0x5e]]
    %v694 = vstv %s693
    %v695 = vmul.f32 %v694, %v684
    %v696 = vadd.f32 %v679, %v695
    %s697 = sld [smem:[#allocation7 + $0x82]]
    %v698 = vstv %s697
    %v699 = vmul.f32 %v698, %v684
    %v700 = vadd.f32 %v683, %v699
    %v701 = vld [vmem:[%s278] ss:$4 sm:$0xf]
    %s702 = sld [smem:[#allocation7 + $0x1f]]
    %v703 = vstv %s702
    %v704 = vmul.f32 %v703, %v701
    %v705 = vadd.f32 %v688, %v704
    %s706 = sld [smem:[#allocation7 + $0x43]]
    %v707 = vstv %s706
    %v708 = vmul.f32 %v707, %v701
    %v709 = vadd.f32 %v692, %v708
    %s710 = sld [smem:[#allocation7 + $0x67]]
    %v711 = vstv %s710
    %v712 = vmul.f32 %v711, %v701
    %v713 = vadd.f32 %v696, %v712
    %s714 = sld [smem:[#allocation7 + $0x8b]]
    %v715 = vstv %s714
    %v716 = vmul.f32 %v715, %v701
    %v717 = vadd.f32 %v700, %v716
    %718 = vst [vmem:[#allocation1] ss:$2 sm:$0xff] %v163
    %s719 = scalar_lea.vmem [#allocation1], 16
    %720 = vst [vmem:[%s719] ss:$2 sm:$0xff] %v164
    %v721 = vld.sshfl [vmem:[#allocation1] sm:$0xff pattern:$0x75316420]
    %v722 = vld.sshfl [vmem:[#allocation1 + $0x8] sm:$0xff pattern:$0x75316420]
    %v723 = vld.sshfl [vmem:[#allocation1 + $0x10] sm:$0xff pattern:$0x75316420]
    %v724 = vld.sshfl [vmem:[#allocation1 + $0x18] sm:$0xff pattern:$0x75316420]
    %729 = vrot.lane.b32.xlu0 %v721, 127
    %v730 = vpop.permute.xlu0 %729
    %731 = vrot.lane.b32.xlu0 %v722, 127
    %v732 = vpop.permute.xlu0 %731
    %733 = vrot.lane.b32.xlu0 %v723, 127
    %v734 = vpop.permute.xlu0 %733
    %735 = vrot.lane.b32.xlu0 %v724, 127
    %v736 = vpop.permute.xlu0 %735
    %vm737 = vcmp.lt.s32.totalorder %v193, 127
    %v738 = vsel %vm737, %v734, %v736
    %v739 = vsel %vm737, %v732, %v734
    %v740 = vsel %vm737, %v730, %v732
    %v741 = vsel %vm737, %v736, %v730
    %v742 = vsel %vm169, 1, 0
    %v743 = vperm.slane %v742, 0
    %v744 = vperm.slane %v742, 1
    %v745 = vperm.slane %v742, 2
    %v746 = vperm.slane %v742, 3
    %vm747 = vcmp.eq.s32.totalorder %v743, 1
    %vm748 = vcmp.eq.s32.totalorder %v744, 1
    %vm749 = vcmp.eq.s32.totalorder %v745, 1
    %vm750 = vcmp.eq.s32.totalorder %v746, 1
    %v751 = vsel %vm747, %v740, 0.0
    %v752 = vsel %vm748, %v739, 0.0
    %v753 = vsel %vm749, %v738, 0.0
    %v754 = vsel %vm750, %v741, 0.0
    %v759 = vrot.slane %v752, 4
    %v760 = vrot.slane %v754, 4
    %v761 = vsel %vm81, %v751, %v759
    %v762 = vsel %vm81, %v753, %v760
    %765 = vst [vmem:[#allocation2] sm:$0xff] %v761
    %766 = vst [vmem:[#allocation2 + $0x8] sm:$0xff] %v762
    %v767 = vld [vmem:[#allocation2] ss:$4 sm:$0xf]
    %s768 = sld [smem:[#allocation7 + $0x5]]
    %v769 = vstv %s768
    %v770 = vmul.f32 %v769, %v767
    %v771 = vadd.f32 %v705, %v770
    %s772 = sld [smem:[#allocation7 + $0x29]]
    %v773 = vstv %s772
    %v774 = vmul.f32 %v773, %v767
    %v775 = vadd.f32 %v709, %v774
    %s776 = sld [smem:[#allocation7 + $0x4d]]
    %v777 = vstv %s776
    %v778 = vmul.f32 %v777, %v767
    %v779 = vadd.f32 %v713, %v778
    %s780 = sld [smem:[#allocation7 + $0x71]]
    %v781 = vstv %s780
    %v782 = vmul.f32 %v781, %v767
    %v783 = vadd.f32 %v717, %v782
    %v784 = vld [vmem:[%s242] ss:$4 sm:$0xf]
    %s785 = sld [smem:[#allocation7 + $0xe]]
    %v786 = vstv %s785
    %v787 = vmul.f32 %v786, %v784
    %v788 = vadd.f32 %v771, %v787
    %s789 = sld [smem:[#allocation7 + $0x32]]
    %v790 = vstv %s789
    %v791 = vmul.f32 %v790, %v784
    %v792 = vadd.f32 %v775, %v791
    %s793 = sld [smem:[#allocation7 + $0x56]]
    %v794 = vstv %s793
    %v795 = vmul.f32 %v794, %v784
    %v796 = vadd.f32 %v779, %v795
    %s797 = sld [smem:[#allocation7 + $0x7a]]
    %v798 = vstv %s797
    %v799 = vmul.f32 %v798, %v784
    %v800 = vadd.f32 %v783, %v799
    %v801 = vld [vmem:[%s260] ss:$4 sm:$0xf]
    %s802 = sld [smem:[#allocation7 + $0x17]]
    %v803 = vstv %s802
    %v804 = vmul.f32 %v803, %v801
    %v805 = vadd.f32 %v788, %v804
    %s806 = sld [smem:[#allocation7 + $0x3b]]
    %v807 = vstv %s806
    %v808 = vmul.f32 %v807, %v801
    %v809 = vadd.f32 %v792, %v808
    %s810 = sld [smem:[#allocation7 + $0x5f]]
    %v811 = vstv %s810
    %v812 = vmul.f32 %v811, %v801
    %v813 = vadd.f32 %v796, %v812
    %s814 = sld [smem:[#allocation7 + $0x83]]
    %v815 = vstv %s814
    %v816 = vmul.f32 %v815, %v801
    %v817 = vadd.f32 %v800, %v816
    %v818 = vld [vmem:[%s278] ss:$4 sm:$0xf]
    %s819 = sld [smem:[#allocation7 + $0x20]]
    %v820 = vstv %s819
    %v821 = vmul.f32 %v820, %v818
    %v822 = vadd.f32 %v805, %v821
    %s823 = sld [smem:[#allocation7 + $0x44]]
    %v824 = vstv %s823
    %v825 = vmul.f32 %v824, %v818
    %v826 = vadd.f32 %v809, %v825
    %s827 = sld [smem:[#allocation7 + $0x68]]
    %v828 = vstv %s827
    %v829 = vmul.f32 %v828, %v818
    %v830 = vadd.f32 %v813, %v829
    %s831 = sld [smem:[#allocation7 + $0x8c]]
    %v832 = vstv %s831
    %v833 = vmul.f32 %v832, %v818
    %v834 = vadd.f32 %v817, %v833
    %835 = vst [vmem:[#allocation1] ss:$2 sm:$0xff] %v163
    %s836 = scalar_lea.vmem [#allocation1], 16
    %837 = vst [vmem:[%s836] ss:$2 sm:$0xff] %v164
    %v838 = vld.sshfl [vmem:[#allocation1] sm:$0xff pattern:$0x75316420]
    %v839 = vld.sshfl [vmem:[#allocation1 + $0x8] sm:$0xff pattern:$0x75316420]
    %v840 = vld.sshfl [vmem:[#allocation1 + $0x10] sm:$0xff pattern:$0x75316420]
    %v841 = vld.sshfl [vmem:[#allocation1 + $0x18] sm:$0xff pattern:$0x75316420]
    %846 = vrot.lane.b32.xlu0 %v838, 113
    %v847 = vpop.permute.xlu0 %846
    %848 = vrot.lane.b32.xlu0 %v839, 113
    %v849 = vpop.permute.xlu0 %848
    %850 = vrot.lane.b32.xlu0 %v840, 113
    %v851 = vpop.permute.xlu0 %850
    %852 = vrot.lane.b32.xlu0 %v841, 113
    %v853 = vpop.permute.xlu0 %852
    %vm854 = vcmp.lt.s32.totalorder %v193, 113
    %v855 = vsel %vm854, %v851, %v853
    %v856 = vsel %vm854, %v849, %v851
    %v857 = vsel %vm854, %v847, %v849
    %v858 = vsel %vm854, %v853, %v847
    %vm859 = vmand %vm167, %vm170
    %v860 = vsel %vm859, 1, 0
    %v861 = vperm.slane %v860, 0
    %v862 = vperm.slane %v860, 1
    %v863 = vperm.slane %v860, 2
    %v864 = vperm.slane %v860, 3
    %vm865 = vcmp.eq.s32.totalorder %v861, 1
    %vm866 = vcmp.eq.s32.totalorder %v862, 1
    %vm867 = vcmp.eq.s32.totalorder %v863, 1
    %vm868 = vcmp.eq.s32.totalorder %v864, 1
    %v869 = vsel %vm865, %v857, 0.0
    %v870 = vsel %vm866, %v856, 0.0
    %v871 = vsel %vm867, %v855, 0.0
    %v872 = vsel %vm868, %v858, 0.0
    %v877 = vrot.slane %v870, 4
    %v878 = vrot.slane %v872, 4
    %v879 = vsel %vm81, %v869, %v877
    %v880 = vsel %vm81, %v871, %v878
    %883 = vst [vmem:[#allocation2] sm:$0xff] %v879
    %884 = vst [vmem:[#allocation2 + $0x8] sm:$0xff] %v880
    %v885 = vld [vmem:[#allocation2] ss:$4 sm:$0xf]
    %s886 = sld [smem:[#allocation7 + $0x6]]
    %v887 = vstv %s886
    %v888 = vmul.f32 %v887, %v885
    %v889 = vadd.f32 %v822, %v888
    %s890 = sld [smem:[#allocation7 + $0x2a]]
    %v891 = vstv %s890
    %v892 = vmul.f32 %v891, %v885
    %v893 = vadd.f32 %v826, %v892
    %s894 = sld [smem:[#allocation7 + $0x4e]]
    %v895 = vstv %s894
    %v896 = vmul.f32 %v895, %v885
    %v897 = vadd.f32 %v830, %v896
    %s898 = sld [smem:[#allocation7 + $0x72]]
    %v899 = vstv %s898
    %v900 = vmul.f32 %v899, %v885
    %v901 = vadd.f32 %v834, %v900
    %v902 = vld [vmem:[%s242] ss:$4 sm:$0xf]
    %s903 = sld [smem:[#allocation7 + $0xf]]
    %v904 = vstv %s903
    %v905 = vmul.f32 %v904, %v902
    %v906 = vadd.f32 %v889, %v905
    %s907 = sld [smem:[#allocation7 + $0x33]]
    %v908 = vstv %s907
    %v909 = vmul.f32 %v908, %v902
    %v910 = vadd.f32 %v893, %v909
    %s911 = sld [smem:[#allocation7 + $0x57]]
    %v912 = vstv %s911
    %v913 = vmul.f32 %v912, %v902
    %v914 = vadd.f32 %v897, %v913
    %s915 = sld [smem:[#allocation7 + $0x7b]]
    %v916 = vstv %s915
    %v917 = vmul.f32 %v916, %v902
    %v918 = vadd.f32 %v901, %v917
    %v919 = vld [vmem:[%s260] ss:$4 sm:$0xf]
    %s920 = sld [smem:[#allocation7 + $0x18]]
    %v921 = vstv %s920
    %v922 = vmul.f32 %v921, %v919
    %v923 = vadd.f32 %v906, %v922
    %s924 = sld [smem:[#allocation7 + $0x3c]]
    %v925 = vstv %s924
    %v926 = vmul.f32 %v925, %v919
    %v927 = vadd.f32 %v910, %v926
    %s928 = sld [smem:[#allocation7 + $0x60]]
    %v929 = vstv %s928
    %v930 = vmul.f32 %v929, %v919
    %v931 = vadd.f32 %v914, %v930
    %s932 = sld [smem:[#allocation7 + $0x84]]
    %v933 = vstv %s932
    %v934 = vmul.f32 %v933, %v919
    %v935 = vadd.f32 %v918, %v934
    %v936 = vld [vmem:[%s278] ss:$4 sm:$0xf]
    %s937 = sld [smem:[#allocation7 + $0x21]]
    %v938 = vstv %s937
    %v939 = vmul.f32 %v938, %v936
    %v940 = vadd.f32 %v923, %v939
    %s941 = sld [smem:[#allocation7 + $0x45]]
    %v942 = vstv %s941
    %v943 = vmul.f32 %v942, %v936
    %v944 = vadd.f32 %v927, %v943
    %s945 = sld [smem:[#allocation7 + $0x69]]
    %v946 = vstv %s945
    %v947 = vmul.f32 %v946, %v936
    %v948 = vadd.f32 %v931, %v947
    %s949 = sld [smem:[#allocation7 + $0x8d]]
    %v950 = vstv %s949
    %v951 = vmul.f32 %v950, %v936
    %v952 = vadd.f32 %v935, %v951
    %953 = vst [vmem:[#allocation1] ss:$2 sm:$0xff] %v163
    %s954 = scalar_lea.vmem [#allocation1], 16
    %955 = vst [vmem:[%s954] ss:$2 sm:$0xff] %v164
    %v956 = vld.sshfl [vmem:[#allocation1] sm:$0xff pattern:$0x75316420]
    %v957 = vld.sshfl [vmem:[#allocation1 + $0x8] sm:$0xff pattern:$0x75316420]
    %v958 = vld.sshfl [vmem:[#allocation1 + $0x10] sm:$0xff pattern:$0x75316420]
    %v959 = vld.sshfl [vmem:[#allocation1 + $0x18] sm:$0xff pattern:$0x75316420]
    %964 = vrot.lane.b32.xlu0 %v956, 112
    %v965 = vpop.permute.xlu0 %964
    %966 = vrot.lane.b32.xlu0 %v957, 112
    %v967 = vpop.permute.xlu0 %966
    %968 = vrot.lane.b32.xlu0 %v958, 112
    %v969 = vpop.permute.xlu0 %968
    %970 = vrot.lane.b32.xlu0 %v959, 112
    %v971 = vpop.permute.xlu0 %970
    %vm972 = vcmp.lt.s32.totalorder %v193, 112
    %v973 = vsel %vm972, %v969, %v971
    %v974 = vsel %vm972, %v967, %v969
    %v975 = vsel %vm972, %v965, %v967
    %v976 = vsel %vm972, %v971, %v965
    %v977 = vsel %vm167, 1, 0
    %v978 = vperm.slane %v977, 0
    %v979 = vperm.slane %v977, 1
    %v980 = vperm.slane %v977, 2
    %v981 = vperm.slane %v977, 3
    %vm982 = vcmp.eq.s32.totalorder %v978, 1
    %vm983 = vcmp.eq.s32.totalorder %v979, 1
    %vm984 = vcmp.eq.s32.totalorder %v980, 1
    %vm985 = vcmp.eq.s32.totalorder %v981, 1
    %v986 = vsel %vm982, %v975, 0.0
    %v987 = vsel %vm983, %v974, 0.0
    %v988 = vsel %vm984, %v973, 0.0
    %v989 = vsel %vm985, %v976, 0.0
    %v994 = vrot.slane %v987, 4
    %v995 = vrot.slane %v989, 4
    %v996 = vsel %vm81, %v986, %v994
    %v997 = vsel %vm81, %v988, %v995
    %1000 = vst [vmem:[#allocation2] sm:$0xff] %v996
    %1001 = vst [vmem:[#allocation2 + $0x8] sm:$0xff] %v997
    %v1002 = vld [vmem:[#allocation2] ss:$4 sm:$0xf]
    %s1003 = sld [smem:[#allocation7 + $0x7]]
    %v1004 = vstv %s1003
    %v1005 = vmul.f32 %v1004, %v1002
    %v1006 = vadd.f32 %v940, %v1005
    %s1007 = sld [smem:[#allocation7 + $0x2b]]
    %v1008 = vstv %s1007
    %v1009 = vmul.f32 %v1008, %v1002
    %v1010 = vadd.f32 %v944, %v1009
    %s1011 = sld [smem:[#allocation7 + $0x4f]]
    %v1012 = vstv %s1011
    %v1013 = vmul.f32 %v1012, %v1002
    %v1014 = vadd.f32 %v948, %v1013
    %s1015 = sld [smem:[#allocation7 + $0x73]]
    %v1016 = vstv %s1015
    %v1017 = vmul.f32 %v1016, %v1002
    %v1018 = vadd.f32 %v952, %v1017
    %v1019 = vld [vmem:[%s242] ss:$4 sm:$0xf]
    %s1020 = sld [smem:[#allocation7 + $0x10]]
    %v1021 = vstv %s1020
    %v1022 = vmul.f32 %v1021, %v1019
    %v1023 = vadd.f32 %v1006, %v1022
    %s1024 = sld [smem:[#allocation7 + $0x34]]
    %v1025 = vstv %s1024
    %v1026 = vmul.f32 %v1025, %v1019
    %v1027 = vadd.f32 %v1010, %v1026
    %s1028 = sld [smem:[#allocation7 + $0x58]]
    %v1029 = vstv %s1028
    %v1030 = vmul.f32 %v1029, %v1019
    %v1031 = vadd.f32 %v1014, %v1030
    %s1032 = sld [smem:[#allocation7 + $0x7c]]
    %v1033 = vstv %s1032
    %v1034 = vmul.f32 %v1033, %v1019
    %v1035 = vadd.f32 %v1018, %v1034
    %v1036 = vld [vmem:[%s260] ss:$4 sm:$0xf]
    %s1037 = sld [smem:[#allocation7 + $0x19]]
    %v1038 = vstv %s1037
    %v1039 = vmul.f32 %v1038, %v1036
    %v1040 = vadd.f32 %v1023, %v1039
    %s1041 = sld [smem:[#allocation7 + $0x3d]]
    %v1042 = vstv %s1041
    %v1043 = vmul.f32 %v1042, %v1036
    %v1044 = vadd.f32 %v1027, %v1043
    %s1045 = sld [smem:[#allocation7 + $0x61]]
    %v1046 = vstv %s1045
    %v1047 = vmul.f32 %v1046, %v1036
    %v1048 = vadd.f32 %v1031, %v1047
    %s1049 = sld [smem:[#allocation7 + $0x85]]
    %v1050 = vstv %s1049
    %v1051 = vmul.f32 %v1050, %v1036
    %v1052 = vadd.f32 %v1035, %v1051
    %v1053 = vld [vmem:[%s278] ss:$4 sm:$0xf]
    %s1054 = sld [smem:[#allocation7 + $0x22]]
    %v1055 = vstv %s1054
    %v1056 = vmul.f32 %v1055, %v1053
    %v1057 = vadd.f32 %v1040, %v1056
    %s1058 = sld [smem:[#allocation7 + $0x46]]
    %v1059 = vstv %s1058
    %v1060 = vmul.f32 %v1059, %v1053
    %v1061 = vadd.f32 %v1044, %v1060
    %s1062 = sld [smem:[#allocation7 + $0x6a]]
    %v1063 = vstv %s1062
    %v1064 = vmul.f32 %v1063, %v1053
    %v1065 = vadd.f32 %v1048, %v1064
    %s1066 = sld [smem:[#allocation7 + $0x8e]]
    %v1067 = vstv %s1066
    %v1068 = vmul.f32 %v1067, %v1053
    %v1069 = vadd.f32 %v1052, %v1068
    %1070 = vst [vmem:[#allocation1] ss:$2 sm:$0xff] %v163
    %s1071 = scalar_lea.vmem [#allocation1], 16
    %1072 = vst [vmem:[%s1071] ss:$2 sm:$0xff] %v164
    %v1073 = vld.sshfl [vmem:[#allocation1] sm:$0xff pattern:$0x75316420]
    %v1074 = vld.sshfl [vmem:[#allocation1 + $0x8] sm:$0xff pattern:$0x75316420]
    %v1075 = vld.sshfl [vmem:[#allocation1 + $0x10] sm:$0xff pattern:$0x75316420]
    %v1076 = vld.sshfl [vmem:[#allocation1 + $0x18] sm:$0xff pattern:$0x75316420]
    %1081 = vrot.lane.b32.xlu0 %v1073, 111
    %v1082 = vpop.permute.xlu0 %1081
    %1083 = vrot.lane.b32.xlu0 %v1074, 111
    %v1084 = vpop.permute.xlu0 %1083
    %1085 = vrot.lane.b32.xlu0 %v1075, 111
    %v1086 = vpop.permute.xlu0 %1085
    %1087 = vrot.lane.b32.xlu0 %v1076, 111
    %v1088 = vpop.permute.xlu0 %1087
    %vm1089 = vcmp.lt.s32.totalorder %v193, 111
    %v1090 = vsel %vm1089, %v1086, %v1088
    %v1091 = vsel %vm1089, %v1084, %v1086
    %v1092 = vsel %vm1089, %v1082, %v1084
    %v1093 = vsel %vm1089, %v1088, %v1082
    %vm1094 = vmand %vm167, %vm169
    %v1095 = vsel %vm1094, 1, 0
    %v1096 = vperm.slane %v1095, 0
    %v1097 = vperm.slane %v1095, 1
    %v1098 = vperm.slane %v1095, 2
    %v1099 = vperm.slane %v1095, 3
    %vm1100 = vcmp.eq.s32.totalorder %v1096, 1
    %vm1101 = vcmp.eq.s32.totalorder %v1097, 1
    %vm1102 = vcmp.eq.s32.totalorder %v1098, 1
    %vm1103 = vcmp.eq.s32.totalorder %v1099, 1
    %v1104 = vsel %vm1100, %v1092, 0.0
    %v1105 = vsel %vm1101, %v1091, 0.0
    %v1106 = vsel %vm1102, %v1090, 0.0
    %v1107 = vsel %vm1103, %v1093, 0.0
    %v1112 = vrot.slane %v1105, 4
    %v1113 = vrot.slane %v1107, 4
    %v1114 = vsel %vm81, %v1104, %v1112
    %v1115 = vsel %vm81, %v1106, %v1113
    %1118 = vst [vmem:[#allocation2] sm:$0xff] %v1114
    %1119 = vst [vmem:[#allocation2 + $0x8] sm:$0xff] %v1115
    %v1120 = vld [vmem:[#allocation2] ss:$4 sm:$0xf]
    %s1121 = sld [smem:[#allocation7 + $0x8]]
    %v1122 = vstv %s1121
    %v1123 = vmul.f32 %v1122, %v1120
    %v1124 = vadd.f32 %v1057, %v1123
    %s1125 = sld [smem:[#allocation7 + $0x2c]]
    %v1126 = vstv %s1125
    %v1127 = vmul.f32 %v1126, %v1120
    %v1128 = vadd.f32 %v1061, %v1127
    %s1129 = sld [smem:[#allocation7 + $0x50]]
    %v1130 = vstv %s1129
    %v1131 = vmul.f32 %v1130, %v1120
    %v1132 = vadd.f32 %v1065, %v1131
    %s1133 = sld [smem:[#allocation7 + $0x74]]
    %v1134 = vstv %s1133
    %v1135 = vmul.f32 %v1134, %v1120
    %v1136 = vadd.f32 %v1069, %v1135
    %v1137 = vld [vmem:[%s242] ss:$4 sm:$0xf]
    %s1138 = sld [smem:[#allocation7 + $0x11]]
    %v1139 = vstv %s1138
    %v1140 = vmul.f32 %v1139, %v1137
    %v1141 = vadd.f32 %v1124, %v1140
    %s1142 = sld [smem:[#allocation7 + $0x35]]
    %v1143 = vstv %s1142
    %v1144 = vmul.f32 %v1143, %v1137
    %v1145 = vadd.f32 %v1128, %v1144
    %s1146 = sld [smem:[#allocation7 + $0x59]]
    %v1147 = vstv %s1146
    %v1148 = vmul.f32 %v1147, %v1137
    %v1149 = vadd.f32 %v1132, %v1148
    %s1150 = sld [smem:[#allocation7 + $0x7d]]
    %v1151 = vstv %s1150
    %v1152 = vmul.f32 %v1151, %v1137
    %v1153 = vadd.f32 %v1136, %v1152
    %v1154 = vld [vmem:[%s260] ss:$4 sm:$0xf]
    %s1155 = sld [smem:[#allocation7 + $0x1a]]
    %v1156 = vstv %s1155
    %v1157 = vmul.f32 %v1156, %v1154
    %v1158 = vadd.f32 %v1141, %v1157
    %s1159 = sld [smem:[#allocation7 + $0x3e]]
    %v1160 = vstv %s1159
    %v1161 = vmul.f32 %v1160, %v1154
    %v1162 = vadd.f32 %v1145, %v1161
    %s1163 = sld [smem:[#allocation7 + $0x62]]
    %v1164 = vstv %s1163
    %v1165 = vmul.f32 %v1164, %v1154
    %v1166 = vadd.f32 %v1149, %v1165
    %s1167 = sld [smem:[#allocation7 + $0x86]]
    %v1168 = vstv %s1167
    %v1169 = vmul.f32 %v1168, %v1154
    %v1170 = vadd.f32 %v1153, %v1169
    %v1171 = vld [vmem:[%s278] ss:$4 sm:$0xf]
    %s1172 = sld [smem:[#allocation7 + $0x23]]
    %v1173 = vstv %s1172
    %v1174 = vmul.f32 %v1173, %v1171
    %v1175 = vadd.f32 %v1158, %v1174
    %s1176 = sld [smem:[#allocation7 + $0x47]]
    %v1177 = vstv %s1176
    %v1178 = vmul.f32 %v1177, %v1171
    %v1179 = vadd.f32 %v1162, %v1178
    %s1180 = sld [smem:[#allocation7 + $0x6b]]
    %v1181 = vstv %s1180
    %v1182 = vmul.f32 %v1181, %v1171
    %v1183 = vadd.f32 %v1166, %v1182
    %s1184 = sld [smem:[#allocation7 + $0x8f]]
    %v1185 = vstv %s1184
    %v1186 = vmul.f32 %v1185, %v1171
    %v1187 = vadd.f32 %v1170, %v1186
    %v1188 = vld [vmem:[#allocation3] ss:$4 sm:$0xf]
    %v1189 = vadd.f32 %v1188, %v1175
    %s1190 = sld [smem:[#allocation8]]
    %v1191 = vstv %s1190
    %v1192 = vadd.f32 %v1189, %v1191
    %v1193 = vlaneseq
    %vm1194 = vcmp.ge.s32.totalorder %v1193, 0
    %vm1195 = vcmp.lt.s32.totalorder %v1193, 512
    %vm1196 = vmand %vm1194, %vm1195
    %1197 = vst.msk [vmem:[#allocation10] ss:$4 sm:$0xf] %vm1196, %v1192
    %s1198 = scalar_lea.vmem [#allocation3], 1
    %v1199 = vld [vmem:[%s1198] ss:$4 sm:$0xf]
    %v1200 = vadd.f32 %v1199, %v1179
    %s1201 = sld [smem:[#allocation8 + $0x1]]
    %v1202 = vstv %s1201
    %v1203 = vadd.f32 %v1200, %v1202
    %s1204 = scalar_lea.vmem [#allocation10], 1
    %1205 = vst.msk [vmem:[%s1204] ss:$4 sm:$0xf] %vm1196, %v1203
    %s1206 = scalar_lea.vmem [#allocation3], 2
    %v1207 = vld [vmem:[%s1206] ss:$4 sm:$0xf]
    %v1208 = vadd.f32 %v1207, %v1183
    %s1209 = sld [smem:[#allocation8 + $0x2]]
    %v1210 = vstv %s1209
    %v1211 = vadd.f32 %v1208, %v1210
    %s1212 = scalar_lea.vmem [#allocation10], 2
    %1213 = vst.msk [vmem:[%s1212] ss:$4 sm:$0xf] %vm1196, %v1211
    %s1214 = scalar_lea.vmem [#allocation3], 3
    %v1215 = vld [vmem:[%s1214] ss:$4 sm:$0xf]
    %v1216 = vadd.f32 %v1215, %v1187
    %s1217 = sld [smem:[#allocation8 + $0x3]]
    %v1218 = vstv %s1217
    %v1219 = vadd.f32 %v1216, %v1218
    %s1220 = scalar_lea.vmem [#allocation10], 3
    %1221 = vst.msk [vmem:[%s1220] ss:$4 sm:$0xf] %vm1196, %v1219
    // Predicated region
    $region42: #{tpu_custom_call.1} parent=1 // pred_check
      _
    $region43: #{tpu_custom_call.1} parent=1 // pred_check_branch
      %1223 = sbr.rel (0) target = $region45
    $region44: #{tpu_custom_call.1} parent=1 // pred_region
      %1225 = vsyncadd [#allocation5], 0
      %s1227 = sshll.u32 [#allocation10], 4
      %s1228 = int_to_ptr.vmem [resolvable:$true] %s1227
      %s1229 = sshll.u32 %s7, 4
      %s1230 = int_to_ptr.hbm [resolvable:$true] %s1229
      %1232 = dma.vmem_to_hbm [thread:$0]  %s1228, 256, %s1230, [#allocation5]
    $region45: #{tpu_custom_call.1} parent=1 // pred_fallthru
      _
    // Predicated region
    $region46: #{tpu_custom_call.1} parent=1 // pred_check
      _
    $region47: #{tpu_custom_call.1} parent=1 // pred_check_branch
      %1234 = sbr.rel (0) target = $region49
    $region48: #{tpu_custom_call.1} parent=1 // pred_region
      %1236 = dma.done [#allocation5], 256
    $region49: #{tpu_custom_call.1} parent=1 // pred_fallthru
      _
    %1237 = vsyncpa [#allocation4], 1
    %1238 = vsyncpa [#allocation5], 1
    %1239 = vsyncpa [#allocation6], 1
    %1240 = vsyncpa [#allocation9], 1

</llo_original>
